<compile_context>
chip_gen: v5e
topology: v5e:2x2
jax: 0.10.0
libtpu: 0.0.40
codegen_flags: <defaults>
</compile_context>

<pallas_src>
import math

import jax
import jax.numpy as jnp
from jax.experimental import pallas as pl
from jax.experimental.pallas import tpu as pltpu

LANE = 128

# --- fused sincos constants -------------------------------------------------
_TWO_OVER_PI = 0.6366197723675814
# 3-term Cody-Waite split of pi/2 (Cephes DP1/DP2/DP3 scaled by 2).
_PIO2_1 = 1.5703125
_PIO2_2 = 4.837512969970703e-4
_PIO2_3 = 7.54978995489188e-8
# Cephes single-precision minimax coefficients, valid on |r| <= pi/4.
_S1, _S2, _S3 = -1.6666654611e-1, 8.3321608736e-3, -1.9515295891e-4
_C1, _C2, _C3 = 4.166664568298827e-2, -1.388731625493765e-3, 2.443315711809948e-5


def _round_up(n, m):
    return ((n + m - 1) // m) * m


def _sincos(x):
    """Fused sin(x), cos(x): one shared range reduction, two polynomials.

    jnp.sin and jnp.cos each redo the (expensive) range reduction on the VPU;
    sharing it cuts ~30-40% of the transcendental VALU work.
    """
    k = jnp.floor(x * _TWO_OVER_PI + 0.5)          # nearest integer, as f32
    r = x - k * _PIO2_1                            # Cody-Waite reduction
    r = r - k * _PIO2_2
    r = r - k * _PIO2_3
    r2 = r * r
    sp = r + r * r2 * (_S1 + r2 * (_S2 + r2 * _S3))            # sin(r)
    cp = 1.0 - 0.5 * r2 + r2 * r2 * (_C1 + r2 * (_C2 + r2 * _C3))  # cos(r)
    q = k.astype(jnp.int32) & 3                    # quadrant (two's-complement mod 4)
    swap = (q & 1) == 1
    s_base = jnp.where(swap, cp, sp)
    c_base = jnp.where(swap, sp, cp)
    sin_neg = (q == 2) | (q == 3)
    cos_neg = (q == 1) | (q == 2)
    s = jnp.where(sin_neg, -s_base, s_base)
    c = jnp.where(cos_neg, -c_base, c_base)
    return s, c


def fourier_mlp_kernel(x_ref, bmat_ref, w1_ref, b1_ref, w2_ref, b2_ref, o_ref):
    x = x_ref[...]                                              # [TB, in] f32
    # 2*pi already folded into bmat.  Tiny K=input_size contraction (<2% of
    # FLOPs); kept f32 so the sin/cos arguments stay precise.
    proj = jnp.dot(x, bmat_ref[...],
                   preferred_element_type=jnp.float32)          # [TB, F/2]
    s, c = _sincos(proj)
    # f_half is a multiple of 128 here, so this join is a vreg-aligned
    # placement (no cross-lane relayout); the hidden layer becomes a single
    # full-depth (K=fourier_dim) MXU matmul against the unsplit W1.
    ff = jnp.concatenate([s, c], axis=-1).astype(w1_ref.dtype)  # [TB, F] bf16
    h = jnp.dot(ff, w1_ref[...], preferred_element_type=jnp.float32)
    h = jnp.maximum(h + b1_ref[...], 0.0)                       # [TB, H] f32
    out = jnp.dot(h.astype(w2_ref.dtype), w2_ref[...],
                  preferred_element_type=jnp.float32)           # [TB, out_pad]
    # bf16 store halves the (lane-padded) HBM writeback, the dominant HBM term.
    o_ref[...] = (out + b2_ref[...]).astype(o_ref.dtype)


def prepare_params(bmat, w1, b1, w2, b2, mxu_dtype=jnp.bfloat16):
    """One-time parameter transform (fold 2*pi, quantize weights, lane-pad)."""
    fourier_dim = w1.shape[0]
    assert fourier_dim % 2 == 0, "fourier_dim must be even"
    assert bmat.shape[1] == fourier_dim // 2
    out_dim = w2.shape[1]
    out_pad = _round_up(out_dim, LANE)
    bmat2pi = (2.0 * math.pi * bmat).astype(jnp.float32)
    w1_q = w1.astype(mxu_dtype)
    w2_pad = jnp.pad(w2, ((0, 0), (0, out_pad - out_dim))).astype(mxu_dtype)
    b2_pad = jnp.pad(b2, ((0, 0), (0, out_pad - out_dim))).astype(jnp.float32)
    return bmat2pi, w1_q, b1.astype(jnp.float32), w2_pad, b2_pad


def fourier_mlp_forward(x, params, output_size, *, block_batch=512):
    bmat2pi, w1, b1, w2_pad, b2_pad = params
    batch, in_dim = x.shape
    f_half = bmat2pi.shape[1]
    fourier_dim, hidden = w1.shape
    out_pad = w2_pad.shape[1]

    # Batch tile: multiple of 8 sublanes, capped by block_batch, and sized so
    # the grid has >= 2 steps when possible (otherwise the "parallel" axis
    # leaves one of v7x's two TensorCores idle).  Large tiles amortize the
    # ~0.35us per-grid-step overhead.
    tb = min(block_batch, max(8, _round_up(pl.cdiv(batch, 2), 8)))
    batch_pad = _round_up(batch, tb)
    if batch_pad != batch:
        x = jnp.pad(x, ((0, batch_pad - batch), (0, 0)))
    grid = (batch_pad // tb,)

    flops = 2 * batch_pad * (in_dim * f_half + fourier_dim * hidden
                             + hidden * out_pad)
    transcendentals = batch_pad * fourier_dim
    bytes_accessed = (4 * (batch_pad * in_dim + bmat2pi.size + b1.size
                           + b2_pad.size)
                      + 2 * (w1.size + w2_pad.size + batch_pad * out_pad))

    # VMEM budget: double-buffered x/out tiles, resident (but still
    # double-buffered by default) weights, plus f32 intermediates; 2x slack.
    tile_bytes = tb * (in_dim * 4 + out_pad * 2)
    weight_bytes = (bmat2pi.size * 4 + w1.size * 2 + b1.size * 4
                    + w2_pad.size * 2 + b2_pad.size * 4)
    interm_bytes = tb * (4 * f_half * 4 + fourier_dim * 2 + hidden * 4
                         + out_pad * 4)
    vmem_limit = int(min(64 * 1024 * 1024,
                         max(32 * 1024 * 1024,
                             2 * (2 * tile_bytes + 2 * weight_bytes
                                  + interm_bytes))))

    out = pl.pallas_call(
        fourier_mlp_kernel,
        out_shape=jax.ShapeDtypeStruct((batch_pad, out_pad), jnp.bfloat16),
        grid=grid,
        in_specs=[
            pl.BlockSpec((tb, in_dim), lambda i: (i, 0)),           # x tile
            pl.BlockSpec((in_dim, f_half), lambda i: (0, 0)),       # 2*pi*B (resident)
            pl.BlockSpec((fourier_dim, hidden), lambda i: (0, 0)),  # W1 (resident)
            pl.BlockSpec((1, hidden), lambda i: (0, 0)),            # b1 (resident)
            pl.BlockSpec((hidden, out_pad), lambda i: (0, 0)),      # W2 (resident)
            pl.BlockSpec((1, out_pad), lambda i: (0, 0)),           # b2 (resident)
        ],
        out_specs=pl.BlockSpec((tb, out_pad), lambda i: (i, 0)),
        compiler_params=pltpu.CompilerParams(
            dimension_semantics=("parallel",),
            vmem_limit_bytes=vmem_limit),
        cost_estimate=pl.CostEstimate(
            flops=flops, transcendentals=transcendentals,
            bytes_accessed=bytes_accessed),
    )(x, bmat2pi, w1, b1, w2_pad, b2_pad)

    return out[:batch, :output_size].astype(jnp.float32)


def init_params(key, input_size, output_size, hidden_dim, fourier_dim, sigma):
    """Deterministic synthetic parameter init (matches PyTorch shapes)."""
    kB, k1w, k1b, k2w, k2b = jax.random.split(key, 5)
    # self.B = Normal(0, sigma) of shape (input_size, fourier_dim // 2)
    bmat = sigma * jax.random.normal(kB, (input_size, fourier_dim // 2),
                                     jnp.float32)
    # nn.Linear(fourier_dim, hidden_dim), stored as [in, out]
    lim1 = 1.0 / math.sqrt(fourier_dim)
    w1 = jax.random.uniform(k1w, (fourier_dim, hidden_dim), jnp.float32,
                            -lim1, lim1)
    b1 = jax.random.uniform(k1b, (1, hidden_dim), jnp.float32, -lim1, lim1)
    # nn.Linear(hidden_dim, output_size), stored as [in, out]
    lim2 = 1.0 / math.sqrt(hidden_dim)
    w2 = jax.random.uniform(k2w, (hidden_dim, output_size), jnp.float32,
                            -lim2, lim2)
    b2 = jax.random.uniform(k2b, (1, output_size), jnp.float32, -lim2, lim2)
    return bmat, w1, b1, w2, b2


def reference_forward(x, bmat, w1, b1, w2, b2):
    """Pure-JAX f32 reference mirroring the PyTorch module."""
    proj = 2.0 * math.pi * (x @ bmat)
    ff = jnp.concatenate([jnp.sin(proj), jnp.cos(proj)], axis=-1)
    h = jnp.maximum(ff @ w1 + b1, 0.0)
    return h @ w2 + b2


if __name__ == "__main__":
    # Small shapes consistent with the module: x is [batch, input_size].
    batch = 256           # yields a 2-step batch grid (exercises tiling/megacore)
    input_size = 16
    output_size = 8
    hidden_dim = 128
    fourier_dim = 256
    sigma = 1.0

    key = jax.random.PRNGKey(0)
    kx, kp = jax.random.split(key)
    x = jax.random.normal(kx, (batch, input_size), jnp.float32)
    bmat, w1, b1, w2, b2 = init_params(
        kp, input_size, output_size, hidden_dim, fourier_dim, sigma)

    params = prepare_params(bmat, w1, b1, w2, b2)
    out = fourier_mlp_forward(x, params, output_size)
    out = jax.block_until_ready(out)

    ref = reference_forward(x, bmat, w1, b1, w2, b2)
    assert out.shape == (batch, output_size), out.shape
    # bf16 MXU operands + bf16 output storage (f32 accumulation) -> loosened
    # tolerance vs the f32 reference.  A sincos quadrant bug would show as
    # O(1) errors, far above this.
    assert jnp.allclose(out, ref, atol=3e-2, rtol=3e-2), (
        "mismatch vs reference, max abs err = "
        f"{float(jnp.max(jnp.abs(out - ref)))}")

    print("KERNEL_OK")
</pallas_src>

<mosaic_0001>
module attributes {stable_mosaic.version = 11 : i64} {
  func.func @fourier_mlp_kernel(%arg0: i32, %arg1: memref<128x16xf32, #tpu.memory_space<vmem>>, %arg2: memref<16x128xf32, #tpu.memory_space<vmem>>, %arg3: memref<256x128xbf16, #tpu.memory_space<vmem>>, %arg4: memref<1x128xf32, #tpu.memory_space<vmem>>, %arg5: memref<128x128xbf16, #tpu.memory_space<vmem>>, %arg6: memref<1x128xf32, #tpu.memory_space<vmem>>, %arg7: memref<128x128xbf16, #tpu.memory_space<vmem>>) attributes {dimension_semantics = [#tpu.dimension_semantics<parallel>], iteration_bounds = array<i64: 2>, scalar_prefetch = 0 : i64, scratch_operands = 0 : i64, tpu.core_type = #tpu.core_type<tc>, window_params = [{transform_indices = @transform_0, window_bounds = array<i64: 128, 16>}, {pipeline_mode = #tpu.pipeline_mode<synchronous>, transform_indices = @transform_1, window_bounds = array<i64: 16, 128>}, {pipeline_mode = #tpu.pipeline_mode<synchronous>, transform_indices = @transform_2, window_bounds = array<i64: 256, 128>}, {pipeline_mode = #tpu.pipeline_mode<synchronous>, transform_indices = @transform_3, window_bounds = array<i64: 1, 128>}, {pipeline_mode = #tpu.pipeline_mode<synchronous>, transform_indices = @transform_4, window_bounds = array<i64: 128, 128>}, {pipeline_mode = #tpu.pipeline_mode<synchronous>, transform_indices = @transform_5, window_bounds = array<i64: 1, 128>}, {transform_indices = @transform_6, window_bounds = array<i64: 128, 128>}]} {
    %c0 = arith.constant 0 : index
    %c0_0 = arith.constant 0 : index
    %0 = vector.load %arg1[%c0, %c0_0] : memref<128x16xf32, #tpu.memory_space<vmem>>, vector<128x16xf32>
    %c0_1 = arith.constant 0 : index
    %c0_2 = arith.constant 0 : index
    %1 = vector.load %arg2[%c0_1, %c0_2] : memref<16x128xf32, #tpu.memory_space<vmem>>, vector<16x128xf32>
    %cst = arith.constant dense<0.000000e+00> : vector<128x128xf32>
    %2 = tpu.matmul %0, %1, %cst {dimension_numbers = #tpu.dot_dimension_numbers<[1], [0], [0], [1], [0, 0, 1, 1], [], []>} : vector<128x16xf32>, vector<16x128xf32>, vector<128x128xf32> -> vector<128x128xf32>
    %cst_3 = arith.constant 0.636619746 : f32
    %3 = vector.broadcast %cst_3 : f32 to vector<128x128xf32>
    %4 = arith.mulf %2, %3 : vector<128x128xf32>
    %cst_4 = arith.constant 5.000000e-01 : f32
    %5 = vector.broadcast %cst_4 : f32 to vector<128x128xf32>
    %6 = arith.addf %4, %5 : vector<128x128xf32>
    %7 = math.floor %6 : vector<128x128xf32>
    %cst_5 = arith.constant 1.5703125 : f32
    %8 = vector.broadcast %cst_5 : f32 to vector<128x128xf32>
    %9 = arith.mulf %7, %8 : vector<128x128xf32>
    %10 = arith.subf %2, %9 : vector<128x128xf32>
    %cst_6 = arith.constant 4.83751297E-4 : f32
    %11 = vector.broadcast %cst_6 : f32 to vector<128x128xf32>
    %12 = arith.mulf %7, %11 : vector<128x128xf32>
    %13 = arith.subf %10, %12 : vector<128x128xf32>
    %cst_7 = arith.constant 7.549790e-08 : f32
    %14 = vector.broadcast %cst_7 : f32 to vector<128x128xf32>
    %15 = arith.mulf %7, %14 : vector<128x128xf32>
    %16 = arith.subf %13, %15 : vector<128x128xf32>
    %17 = arith.mulf %16, %16 : vector<128x128xf32>
    %18 = arith.mulf %16, %17 : vector<128x128xf32>
    %cst_8 = arith.constant -1.95152956E-4 : f32
    %19 = vector.broadcast %cst_8 : f32 to vector<128x128xf32>
    %20 = arith.mulf %17, %19 : vector<128x128xf32>
    %cst_9 = arith.constant 0.00833216123 : f32
    %21 = vector.broadcast %cst_9 : f32 to vector<128x128xf32>
    %22 = arith.addf %21, %20 : vector<128x128xf32>
    %23 = arith.mulf %17, %22 : vector<128x128xf32>
    %cst_10 = arith.constant -0.166666552 : f32
    %24 = vector.broadcast %cst_10 : f32 to vector<128x128xf32>
    %25 = arith.addf %24, %23 : vector<128x128xf32>
    %26 = arith.mulf %18, %25 : vector<128x128xf32>
    %27 = arith.addf %16, %26 : vector<128x128xf32>
    %cst_11 = arith.constant 5.000000e-01 : f32
    %28 = vector.broadcast %cst_11 : f32 to vector<128x128xf32>
    %29 = arith.mulf %28, %17 : vector<128x128xf32>
    %cst_12 = arith.constant 1.000000e+00 : f32
    %30 = vector.broadcast %cst_12 : f32 to vector<128x128xf32>
    %31 = arith.subf %30, %29 : vector<128x128xf32>
    %32 = arith.mulf %17, %17 : vector<128x128xf32>
    %cst_13 = arith.constant 2.44331568E-5 : f32
    %33 = vector.broadcast %cst_13 : f32 to vector<128x128xf32>
    %34 = arith.mulf %17, %33 : vector<128x128xf32>
    %cst_14 = arith.constant -0.00138873165 : f32
    %35 = vector.broadcast %cst_14 : f32 to vector<128x128xf32>
    %36 = arith.addf %35, %34 : vector<128x128xf32>
    %37 = arith.mulf %17, %36 : vector<128x128xf32>
    %cst_15 = arith.constant 0.0416666456 : f32
    %38 = vector.broadcast %cst_15 : f32 to vector<128x128xf32>
    %39 = arith.addf %38, %37 : vector<128x128xf32>
    %40 = arith.mulf %32, %39 : vector<128x128xf32>
    %41 = arith.addf %31, %40 : vector<128x128xf32>
    %42 = arith.fptosi %7 : vector<128x128xf32> to vector<128x128xi32>
    %c3_i32 = arith.constant 3 : i32
    %43 = vector.broadcast %c3_i32 : i32 to vector<128x128xi32>
    %44 = arith.andi %42, %43 : vector<128x128xi32>
    %c1_i32 = arith.constant 1 : i32
    %45 = vector.broadcast %c1_i32 : i32 to vector<128x128xi32>
    %46 = arith.andi %44, %45 : vector<128x128xi32>
    %c1_i32_16 = arith.constant 1 : i32
    %47 = vector.broadcast %c1_i32_16 : i32 to vector<128x128xi32>
    %48 = arith.cmpi eq, %46, %47 : vector<128x128xi32>
    %49 = arith.select %48, %41, %27 : vector<128x128xi1>, vector<128x128xf32>
    %50 = arith.select %48, %27, %41 : vector<128x128xi1>, vector<128x128xf32>
    %c2_i32 = arith.constant 2 : i32
    %51 = vector.broadcast %c2_i32 : i32 to vector<128x128xi32>
    %52 = arith.cmpi eq, %44, %51 : vector<128x128xi32>
    %c3_i32_17 = arith.constant 3 : i32
    %53 = vector.broadcast %c3_i32_17 : i32 to vector<128x128xi32>
    %54 = arith.cmpi eq, %44, %53 : vector<128x128xi32>
    %55 = arith.ori %52, %54 : vector<128x128xi1>
    %c1_i32_18 = arith.constant 1 : i32
    %56 = vector.broadcast %c1_i32_18 : i32 to vector<128x128xi32>
    %57 = arith.cmpi eq, %44, %56 : vector<128x128xi32>
    %c2_i32_19 = arith.constant 2 : i32
    %58 = vector.broadcast %c2_i32_19 : i32 to vector<128x128xi32>
    %59 = arith.cmpi eq, %44, %58 : vector<128x128xi32>
    %60 = arith.ori %57, %59 : vector<128x128xi1>
    %cst_20 = arith.constant 0.000000e+00 : f32
    %61 = vector.broadcast %cst_20 : f32 to vector<128x128xf32>
    %62 = arith.subf %61, %49 : vector<128x128xf32>
    %63 = arith.select %55, %62, %49 : vector<128x128xi1>, vector<128x128xf32>
    %cst_21 = arith.constant 0.000000e+00 : f32
    %64 = vector.broadcast %cst_21 : f32 to vector<128x128xf32>
    %65 = arith.subf %64, %50 : vector<128x128xf32>
    %66 = arith.select %60, %65, %50 : vector<128x128xi1>, vector<128x128xf32>
    %67 = tpu.concatenate %63, %66 in 1 : vector<128x128xf32>, vector<128x128xf32> -> vector<128x256xf32>
    %68 = arith.truncf %67 : vector<128x256xf32> to vector<128x256xbf16>
    %c0_22 = arith.constant 0 : index
    %c0_23 = arith.constant 0 : index
    %69 = vector.load %arg3[%c0_22, %c0_23] : memref<256x128xbf16, #tpu.memory_space<vmem>>, vector<256x128xbf16>
    %cst_24 = arith.constant dense<0.000000e+00> : vector<128x128xf32>
    %70 = tpu.matmul %68, %69, %cst_24 {dimension_numbers = #tpu.dot_dimension_numbers<[1], [0], [0], [1], [0, 0, 1, 1], [], []>} : vector<128x256xbf16>, vector<256x128xbf16>, vector<128x128xf32> -> vector<128x128xf32>
    %c0_25 = arith.constant 0 : index
    %c0_26 = arith.constant 0 : index
    %71 = vector.load %arg4[%c0_25, %c0_26] : memref<1x128xf32, #tpu.memory_space<vmem>>, vector<1x128xf32>
    %72 = vector.broadcast %71 : vector<1x128xf32> to vector<128x128xf32>
    %73 = arith.addf %70, %72 : vector<128x128xf32>
    %cst_27 = arith.constant 0.000000e+00 : f32
    %74 = vector.broadcast %cst_27 : f32 to vector<128x128xf32>
    %75 = arith.maximumf %73, %74 : vector<128x128xf32>
    %76 = arith.truncf %75 : vector<128x128xf32> to vector<128x128xbf16>
    %c0_28 = arith.constant 0 : index
    %c0_29 = arith.constant 0 : index
    %77 = vector.load %arg5[%c0_28, %c0_29] : memref<128x128xbf16, #tpu.memory_space<vmem>>, vector<128x128xbf16>
    %cst_30 = arith.constant dense<0.000000e+00> : vector<128x128xf32>
    %78 = tpu.matmul %76, %77, %cst_30 {dimension_numbers = #tpu.dot_dimension_numbers<[1], [0], [0], [1], [0, 0, 1, 1], [], []>} : vector<128x128xbf16>, vector<128x128xbf16>, vector<128x128xf32> -> vector<128x128xf32>
    %c0_31 = arith.constant 0 : index
    %c0_32 = arith.constant 0 : index
    %79 = vector.load %arg6[%c0_31, %c0_32] : memref<1x128xf32, #tpu.memory_space<vmem>>, vector<1x128xf32>
    %80 = vector.broadcast %79 : vector<1x128xf32> to vector<128x128xf32>
    %81 = arith.addf %78, %80 : vector<128x128xf32>
    %82 = arith.truncf %81 : vector<128x128xf32> to vector<128x128xbf16>
    %c0_33 = arith.constant 0 : index
    %c0_34 = arith.constant 0 : index
    %83 = vector.load %arg7[%c0_33, %c0_34] : memref<128x128xbf16, #tpu.memory_space<vmem>>, vector<128x128xbf16>
    tpu.vector_store %arg7[%c0_33, %c0_34], %82 {strides = array<i32>} : memref<128x128xbf16, #tpu.memory_space<vmem>>, vector<128x128xbf16>,
    return
  }
  func.func @transform_0(%arg0: i32) -> (i32, i32) {
    %c0_i32 = arith.constant 0 : i32
    %c0_i32_0 = arith.constant 0 : i32
    return %arg0, %c0_i32 : i32, i32
  }
  func.func @transform_1(%arg0: i32) -> (i32, i32) {
    %c0_i32 = arith.constant 0 : i32
    %c0_i32_0 = arith.constant 0 : i32
    %c0_i32_1 = arith.constant 0 : i32
    return %c0_i32, %c0_i32_0 : i32, i32
  }
  func.func @transform_2(%arg0: i32) -> (i32, i32) {
    %c0_i32 = arith.constant 0 : i32
    %c0_i32_0 = arith.constant 0 : i32
    %c0_i32_1 = arith.constant 0 : i32
    return %c0_i32, %c0_i32_0 : i32, i32
  }
  func.func @transform_3(%arg0: i32) -> (i32, i32) {
    %c0_i32 = arith.constant 0 : i32
    %c0_i32_0 = arith.constant 0 : i32
    %c0_i32_1 = arith.constant 0 : i32
    return %c0_i32, %c0_i32_0 : i32, i32
  }
  func.func @transform_4(%arg0: i32) -> (i32, i32) {
    %c0_i32 = arith.constant 0 : i32
    %c0_i32_0 = arith.constant 0 : i32
    %c0_i32_1 = arith.constant 0 : i32
    return %c0_i32, %c0_i32_0 : i32, i32
  }
  func.func @transform_5(%arg0: i32) -> (i32, i32) {
    %c0_i32 = arith.constant 0 : i32
    %c0_i32_0 = arith.constant 0 : i32
    %c0_i32_1 = arith.constant 0 : i32
    return %c0_i32, %c0_i32_0 : i32, i32
  }
  func.func @transform_6(%arg0: i32) -> (i32, i32) {
    %c0_i32 = arith.constant 0 : i32
    %c0_i32_0 = arith.constant 0 : i32
    return %arg0, %c0_i32 : i32, i32
  }
}

</mosaic_0001>

<llo_original>
// kernel: tpu_custom_call.1
$region0: #{tpu_custom_call.1}
  #allocation0 [shape = 'u32[]', space=smem, size = 0x4, offset = 0x4, fixed_abs, tag = 'smem constant byte address 0x4 - core index']
  #allocation1 [shape = 'u32[72,128]{1,0:T(1,128)}', space=vmem, size = 0x9000, scoped, tag = 'internal scratch']
  %s0 = inlined_call_operand.vmem [shape: f32[256,16], index: 0, kind: input, shape index: {}]
  %s1 = inlined_call_operand.vmem [shape: f32[16,128], index: 1, kind: input, shape index: {}]
  %s2 = inlined_call_operand.vmem [shape: bf16[256,128], index: 2, kind: input, shape index: {}]
  %s3 = inlined_call_operand.vmem [shape: f32[1,128], index: 3, kind: input, shape index: {}]
  %s4 = inlined_call_operand.vmem [shape: bf16[128,128], index: 4, kind: input, shape index: {}]
  %s5 = inlined_call_operand.vmem [shape: f32[1,128], index: 5, kind: input, shape index: {}]
  %s6 = inlined_call_operand.hbm [shape: bf16[256,128], index: 6, kind: output, shape index: {}]
  %s7 = sld [smem:[#allocation0]]
  $region57: #{tpu_custom_call.1} parent=0
    _
  %s9 = ssub.s32 1, %s7
  %s10 = scalar_select 0, %s9, %s7
  $region1: #{tpu_custom_call.1} parent=0
    #allocation2 [shape = 'u8[65536]{0}', space=vmem, size = 0x10000, scoped, tag = 'output window, operand 0']
    #allocation3 [shape = 's32[2]{0}', space=sflag, size = 0x8, scoped, tag = 'scoped memory for tpu_custom_call.1']
    %11 = vsyncpa [#allocation3], 0
    %s12 = scalar_lea.sflag [#allocation3], 1
    %13 = vsyncpa %s12, 0
    loop: start=0, step=1, limit=4
    $region2: #{tpu_custom_call.1} parent=1 // loop_pre_header
      _
    $region3: #{tpu_custom_call.1} parent=1 // loop_header
      %s15 = sphi 0, %s19
      %p16 = scmp.ge.s32.totalorder %s15, 4
      %s25 = sphi 0, %s27
      %s28 = sphi 0, %s25
      %s29 = sphi 0, %s28
      %s45 = sphi 0, %s29
      %s49 = sphi 0, %s49
      %s51 = sphi 0, %s49
      %s52 = sphi 0, %s51
      %s66 = sphi 0, %s52
      %s70 = sphi 0, %s70
      %s72 = sphi 0, %s70
      %s73 = sphi 0, %s72
      %s87 = sphi 0, %s73
      %s91 = sphi 0, %s91
      %s93 = sphi 0, %s91
      %s94 = sphi 0, %s93
      %s108 = sphi 0, %s94
      %s112 = sphi 0, %s112
      %s114 = sphi 0, %s112
      %s115 = sphi 0, %s114
      %s129 = sphi 0, %s115
      %s133 = sphi 0, %s133
      %s135 = sphi 0, %s133
      %s136 = sphi 0, %s135
      %s150 = sphi 0, %s136
      %s156 = sphi 0, %s158
      %s159 = sphi 0, %s156
      %s160 = sphi 0, %s159
      %s176 = sphi 0, %s160
    $region4: #{tpu_custom_call.1} parent=1 // loop_header_branch
      %18 = sbr.rel (%p16) target = $region8
    $region5: #{tpu_custom_call.1} parent=1 // loop_body
      %s20 = ssub.s32 %s15, 1
      %s21 = ssub.s32 %s15, 2
      %s22 = sadd.s32 %s15, 1
      %s23 = ssub.s32 %s15, %s22
      %p24 = scmp.eq.s32.totalorder %s23, 0
      %s26 = sadd.s32 %s25, 1
      %s27 = scalar_select %p24, %s25, %s26
      %p30 = pneg %p24
      %p31 = scmp.eq.s32.totalorder %s15, 1
      %p32 = por %p30, %p31
      %p33 = scmp.ne.s32.totalorder %s25, %s28
      %p34 = scmp.eq.s32.totalorder %s15, 0
      %p35 = por %p33, %p34
      %p36 = scmp.ne.s32.totalorder %s25, %s28
      %p37 = scmp.eq.s32.totalorder %s20, 1
      %p38 = por %p36, %p37
      %p39 = scmp.ne.s32.totalorder %s28, %s29
      %p40 = scmp.eq.s32.totalorder %s20, 0
      %p41 = por %p39, %p40
      %p42 = scmp.ne.s32.totalorder %s28, %s29
      %p43 = scmp.eq.s32.totalorder %s21, 1
      %p44 = por %p42, %p43
      %p46 = scmp.ne.s32.totalorder %s29, %s45
      %p47 = scmp.eq.s32.totalorder %s21, 0
      %p48 = por %p46, %p47
      %s50 = sadd.s32 %s49, 1
      %p53 = scmp.eq.s32.totalorder %s15, 1
      %p54 = scmp.ne.s32.totalorder %s49, %s51
      %p55 = scmp.eq.s32.totalorder %s15, 0
      %p56 = por %p54, %p55
      %p57 = scmp.ne.s32.totalorder %s49, %s51
      %p58 = scmp.eq.s32.totalorder %s20, 1
      %p59 = por %p57, %p58
      %p60 = scmp.ne.s32.totalorder %s51, %s52
      %p61 = scmp.eq.s32.totalorder %s20, 0
      %p62 = por %p60, %p61
      %p63 = scmp.ne.s32.totalorder %s51, %s52
      %p64 = scmp.eq.s32.totalorder %s21, 1
      %p65 = por %p63, %p64
      %p67 = scmp.ne.s32.totalorder %s52, %s66
      %p68 = scmp.eq.s32.totalorder %s21, 0
      %p69 = por %p67, %p68
      %s71 = sadd.s32 %s70, 1
      %p74 = scmp.eq.s32.totalorder %s15, 1
      %p75 = scmp.ne.s32.totalorder %s70, %s72
      %p76 = scmp.eq.s32.totalorder %s15, 0
      %p77 = por %p75, %p76
      %p78 = scmp.ne.s32.totalorder %s70, %s72
      %p79 = scmp.eq.s32.totalorder %s20, 1
      %p80 = por %p78, %p79
      %p81 = scmp.ne.s32.totalorder %s72, %s73
      %p82 = scmp.eq.s32.totalorder %s20, 0
      %p83 = por %p81, %p82
      %p84 = scmp.ne.s32.totalorder %s72, %s73
      %p85 = scmp.eq.s32.totalorder %s21, 1
      %p86 = por %p84, %p85
      %p88 = scmp.ne.s32.totalorder %s73, %s87
      %p89 = scmp.eq.s32.totalorder %s21, 0
      %p90 = por %p88, %p89
      %s92 = sadd.s32 %s91, 1
      %p95 = scmp.eq.s32.totalorder %s15, 1
      %p96 = scmp.ne.s32.totalorder %s91, %s93
      %p97 = scmp.eq.s32.totalorder %s15, 0
      %p98 = por %p96, %p97
      %p99 = scmp.ne.s32.totalorder %s91, %s93
      %p100 = scmp.eq.s32.totalorder %s20, 1
      %p101 = por %p99, %p100
      %p102 = scmp.ne.s32.totalorder %s93, %s94
      %p103 = scmp.eq.s32.totalorder %s20, 0
      %p104 = por %p102, %p103
      %p105 = scmp.ne.s32.totalorder %s93, %s94
      %p106 = scmp.eq.s32.totalorder %s21, 1
      %p107 = por %p105, %p106
      %p109 = scmp.ne.s32.totalorder %s94, %s108
      %p110 = scmp.eq.s32.totalorder %s21, 0
      %p111 = por %p109, %p110
      %s113 = sadd.s32 %s112, 1
      %p116 = scmp.eq.s32.totalorder %s15, 1
      %p117 = scmp.ne.s32.totalorder %s112, %s114
      %p118 = scmp.eq.s32.totalorder %s15, 0
      %p119 = por %p117, %p118
      %p120 = scmp.ne.s32.totalorder %s112, %s114
      %p121 = scmp.eq.s32.totalorder %s20, 1
      %p122 = por %p120, %p121
      %p123 = scmp.ne.s32.totalorder %s114, %s115
      %p124 = scmp.eq.s32.totalorder %s20, 0
      %p125 = por %p123, %p124
      %p126 = scmp.ne.s32.totalorder %s114, %s115
      %p127 = scmp.eq.s32.totalorder %s21, 1
      %p128 = por %p126, %p127
      %p130 = scmp.ne.s32.totalorder %s115, %s129
      %p131 = scmp.eq.s32.totalorder %s21, 0
      %p132 = por %p130, %p131
      %s134 = sadd.s32 %s133, 1
      %p137 = scmp.eq.s32.totalorder %s15, 1
      %p138 = scmp.ne.s32.totalorder %s133, %s135
      %p139 = scmp.eq.s32.totalorder %s15, 0
      %p140 = por %p138, %p139
      %p141 = scmp.ne.s32.totalorder %s133, %s135
      %p142 = scmp.eq.s32.totalorder %s20, 1
      %p143 = por %p141, %p142
      %p144 = scmp.ne.s32.totalorder %s135, %s136
      %p145 = scmp.eq.s32.totalorder %s20, 0
      %p146 = por %p144, %p145
      %p147 = scmp.ne.s32.totalorder %s135, %s136
      %p148 = scmp.eq.s32.totalorder %s21, 1
      %p149 = por %p147, %p148
      %p151 = scmp.ne.s32.totalorder %s136, %s150
      %p152 = scmp.eq.s32.totalorder %s21, 0
      %p153 = por %p151, %p152
      %s154 = ssub.s32 %s15, %s22
      %p155 = scmp.eq.s32.totalorder %s154, 0
      %s157 = sadd.s32 %s156, 1
      %s158 = scalar_select %p155, %s156, %s157
      %p161 = pneg %p155
      %p162 = scmp.eq.s32.totalorder %s15, 1
      %p163 = por %p161, %p162
      %p164 = scmp.ne.s32.totalorder %s156, %s159
      %p165 = scmp.eq.s32.totalorder %s15, 0
      %p166 = por %p164, %p165
      %p167 = scmp.ne.s32.totalorder %s156, %s159
      %p168 = scmp.eq.s32.totalorder %s20, 1
      %p169 = por %p167, %p168
      %p170 = scmp.ne.s32.totalorder %s159, %s160
      %p171 = scmp.eq.s32.totalorder %s20, 0
      %p172 = por %p170, %p171
      %p173 = scmp.ne.s32.totalorder %s159, %s160
      %p174 = scmp.eq.s32.totalorder %s21, 1
      %p175 = por %p173, %p174
      %p177 = scmp.ne.s32.totalorder %s160, %s176
      %p178 = scmp.eq.s32.totalorder %s21, 0
      %p179 = por %p177, %p178
      %p180 = scmp.le.s32.totalorder 1, %s15
      %p181 = scmp.lt.s32.totalorder %s15, 3
      %p182 = pnand %p180, %p181
      %p183 = pneg %p182
      // Predicated region
      $region9: #{tpu_custom_call.1} parent=5 // pred_check
        _
      $region10: #{tpu_custom_call.1} parent=5 // pred_check_branch
        %185 = sbr.rel (%p182) target = $region12
      $region11: #{tpu_custom_call.1} parent=5 // pred_region
        %s186 = ssub.s32 %s15, 1
        // Predicated region
        $region13: #{tpu_custom_call.1} parent=11 // pred_check
          %p187 = pneg %p62
        $region14: #{tpu_custom_call.1} parent=11 // pred_check_branch
          %189 = sbr.rel (%p187) target = $region16
        $region15: #{tpu_custom_call.1} parent=11 // pred_region
          _
        $region16: #{tpu_custom_call.1} parent=11 // pred_fallthru
          _
        // Predicated region
        $region17: #{tpu_custom_call.1} parent=11 // pred_check
          %p190 = pneg %p83
        $region18: #{tpu_custom_call.1} parent=11 // pred_check_branch
          %192 = sbr.rel (%p190) target = $region20
        $region19: #{tpu_custom_call.1} parent=11 // pred_region
          _
        $region20: #{tpu_custom_call.1} parent=11 // pred_fallthru
          _
        // Predicated region
        $region21: #{tpu_custom_call.1} parent=11 // pred_check
          %p193 = pneg %p104
        $region22: #{tpu_custom_call.1} parent=11 // pred_check_branch
          %195 = sbr.rel (%p193) target = $region24
        $region23: #{tpu_custom_call.1} parent=11 // pred_region
          _
        $region24: #{tpu_custom_call.1} parent=11 // pred_fallthru
          _
        // Predicated region
        $region25: #{tpu_custom_call.1} parent=11 // pred_check
          %p196 = pneg %p125
        $region26: #{tpu_custom_call.1} parent=11 // pred_check_branch
          %198 = sbr.rel (%p196) target = $region28
        $region27: #{tpu_custom_call.1} parent=11 // pred_region
          _
        $region28: #{tpu_custom_call.1} parent=11 // pred_fallthru
          _
        // Predicated region
        $region29: #{tpu_custom_call.1} parent=11 // pred_check
          %p199 = pneg %p146
        $region30: #{tpu_custom_call.1} parent=11 // pred_check_branch
          %201 = sbr.rel (%p199) target = $region32
        $region31: #{tpu_custom_call.1} parent=11 // pred_region
          _
        $region32: #{tpu_custom_call.1} parent=11 // pred_fallthru
          _
      $region12: #{tpu_custom_call.1} parent=5 // pred_fallthru
        _
      %p202 = scmp.lt.s32.totalorder %s15, 2
      // Predicated region
      $region33: #{tpu_custom_call.1} parent=5 // pred_check
        %p203 = pneg %p202
      $region34: #{tpu_custom_call.1} parent=5 // pred_check_branch
        %205 = sbr.rel (%p203) target = $region36
      $region35: #{tpu_custom_call.1} parent=5 // pred_region
        // Predicated region
        $region37: #{tpu_custom_call.1} parent=35 // pred_check
          %p206 = pneg %p35
        $region38: #{tpu_custom_call.1} parent=35 // pred_check_branch
          %208 = sbr.rel (%p206) target = $region40
        $region39: #{tpu_custom_call.1} parent=35 // pred_region
          %s209 = smul.u32 16, %s15
          %p210 = scmp.lt.s32.totalorder %s209, 31
          %s211 = scalar_select %p210, %s209, 31
          %s212 = smul.addr %s211, 8
          %s213 = scalar_lea.vmem %s0, %s212
          %s214 = smul.u32 16, %s15
        $region40: #{tpu_custom_call.1} parent=35 // pred_fallthru
          _
      $region36: #{tpu_custom_call.1} parent=5 // pred_fallthru
        _
      %p215 = scmp.le.s32.totalorder 1, %s15
      %p216 = scmp.lt.s32.totalorder %s15, 3
      %p217 = pnand %p215, %p216
      %p218 = pneg %p217
      // Predicated region
      $region41: #{tpu_custom_call.1} parent=5 // pred_check
        _
      $region42: #{tpu_custom_call.1} parent=5 // pred_check_branch
        %220 = sbr.rel (%p217) target = $region44
      $region43: #{tpu_custom_call.1} parent=5 // pred_region
        %s221 = ssub.s32 %s15, 1
        %s222 = smul.u32 16, %s20
        %p223 = scmp.lt.s32.totalorder %s222, 31
        %s224 = scalar_select %p223, %s222, 31
        %s225 = smul.addr %s224, 8
        %s226 = scalar_lea.vmem %s0, %s225
        %p227 = pneg %p41
        %p228 = pneg %p38
        %p229 = pneg %p62
        %p230 = pneg %p59
        %p231 = pneg %p83
        %p232 = pneg %p80
        %p233 = pneg %p104
        %p234 = pneg %p101
        %p235 = pneg %p125
        %p236 = pneg %p122
        %p237 = pneg %p146
        %p238 = pneg %p143
        %p239 = pneg %p172
        %p240 = pneg %p169
        %s241 = sand.u32 %s159, 1
        %s242 = scalar_lea.sflag [#allocation3], %s241
        %s243 = sand.u32 %s159, 1
        %s244 = smul.addr %s243, 64
        %s245 = scalar_lea.vmem [#allocation2], %s244
        %s246 = smul.u32 16, %s20
        %p247 = scmp.lt.s32.totalorder %s246, 31
        %s248 = scalar_select %p247, %s246, 31
        %s249 = smul.addr %s248, 8
        %s250 = scalar_lea.vmem %s0, %s249
        %s251 = smul.u32 16, %s20
        %s252 = smul.u32 16, %s20
        %v253 = vld [vmem:[%s250] sm:$0xff]
        %v254 = vld [vmem:[%s250 + $0x8] sm:$0xff]
        %v255 = vld [vmem:[%s250 + $0x10] sm:$0xff]
        %v256 = vld [vmem:[%s250 + $0x18] sm:$0xff]
        %v257 = vld [vmem:[%s250 + $0x20] sm:$0xff]
        %v258 = vld [vmem:[%s250 + $0x28] sm:$0xff]
        %v259 = vld [vmem:[%s250 + $0x30] sm:$0xff]
        %v260 = vld [vmem:[%s250 + $0x38] sm:$0xff]
        %v261 = vld [vmem:[%s250 + $0x40] sm:$0xff]
        %v262 = vld [vmem:[%s250 + $0x48] sm:$0xff]
        %v263 = vld [vmem:[%s250 + $0x50] sm:$0xff]
        %v264 = vld [vmem:[%s250 + $0x58] sm:$0xff]
        %v265 = vld [vmem:[%s250 + $0x60] sm:$0xff]
        %v266 = vld [vmem:[%s250 + $0x68] sm:$0xff]
        %v267 = vld [vmem:[%s250 + $0x70] sm:$0xff]
        %v268 = vld [vmem:[%s250 + $0x78] sm:$0xff]
        %v269 = vld [vmem:[%s1] sm:$0xff]
        %v270 = vld [vmem:[%s1 + $0x8] sm:$0xff]
        %vm271 = vcmask 130048
        %v273 = vsel %vm271, %v253, 0
        %v276 = vsel %vm271, %v254, 0
        %v279 = vsel %vm271, %v255, 0
        %v282 = vsel %vm271, %v256, 0
        %v285 = vsel %vm271, %v257, 0
        %v288 = vsel %vm271, %v258, 0
        %v291 = vsel %vm271, %v259, 0
        %v294 = vsel %vm271, %v260, 0
        %v297 = vsel %vm271, %v261, 0
        %v300 = vsel %vm271, %v262, 0
        %v303 = vsel %vm271, %v263, 0
        %v306 = vsel %vm271, %v264, 0
        %v309 = vsel %vm271, %v265, 0
        %v312 = vsel %vm271, %v266, 0
        %v315 = vsel %vm271, %v267, 0
        %v318 = vsel %vm271, %v268, 0
        %320 = vmatpush.msra.mxu0 0.0
        %321 = vmatpush.msra.mxu0 0.0
        %322 = vmatpush.msra.mxu0 0.0
        %323 = vmatpush.msra.mxu0 0.0
        %324 = vmatpush.msra.mxu0 0.0
        %325 = vmatpush.msra.mxu0 0.0
        %326 = vmatpush.msra.mxu0 0.0
        %327 = vmatpush.msra.mxu0 0.0
        %328 = vmatpush.msra.mxu0 0.0
        %329 = vmatpush.msra.mxu0 0.0
        %330 = vmatpush.msra.mxu0 0.0
        %331 = vmatpush.msra.mxu0 0.0
        %332 = vmatpush.msra.mxu0 0.0
        %333 = vmatpush.msra.mxu0 0.0
        %334 = vmatpush.msra.mxu0 %v270
        %335 = vmatpush.msra.mxu0 %v269
        %336 = vmatmul.f32.gmra.mxu0 %v273
        %v337 = vpop.f32.mrf.mxu0
        %v338 = vadd.f32 0.0, %v337
        %339 = vmatmul.f32.gmra.mxu0 %v276
        %v340 = vpop.f32.mrf.mxu0
        %v341 = vadd.f32 0.0, %v340
        %342 = vmatmul.f32.gmra.mxu0 %v279
        %v343 = vpop.f32.mrf.mxu0
        %v344 = vadd.f32 0.0, %v343
        %345 = vmatmul.f32.gmra.mxu0 %v282
        %v346 = vpop.f32.mrf.mxu0
        %v347 = vadd.f32 0.0, %v346
        %348 = vmatmul.f32.gmra.mxu0 %v285
        %v349 = vpop.f32.mrf.mxu0
        %v350 = vadd.f32 0.0, %v349
        %351 = vmatmul.f32.gmra.mxu0 %v288
        %v352 = vpop.f32.mrf.mxu0
        %v353 = vadd.f32 0.0, %v352
        %354 = vmatmul.f32.gmra.mxu0 %v291
        %v355 = vpop.f32.mrf.mxu0
        %v356 = vadd.f32 0.0, %v355
        %357 = vmatmul.f32.gmra.mxu0 %v294
        %v358 = vpop.f32.mrf.mxu0
        %v359 = vadd.f32 0.0, %v358
        %360 = vmatmul.f32.gmra.mxu0 %v297
        %v361 = vpop.f32.mrf.mxu0
        %v362 = vadd.f32 0.0, %v361
        %363 = vmatmul.f32.gmra.mxu0 %v300
        %v364 = vpop.f32.mrf.mxu0
        %v365 = vadd.f32 0.0, %v364
        %366 = vmatmul.f32.gmra.mxu0 %v303
        %v367 = vpop.f32.mrf.mxu0
        %v368 = vadd.f32 0.0, %v367
        %369 = vmatmul.f32.gmra.mxu0 %v306
        %v370 = vpop.f32.mrf.mxu0
        %v371 = vadd.f32 0.0, %v370
        %372 = vmatmul.f32.gmra.mxu0 %v309
        %v373 = vpop.f32.mrf.mxu0
        %v374 = vadd.f32 0.0, %v373
        %375 = vmatmul.f32.gmra.mxu0 %v312
        %v376 = vpop.f32.mrf.mxu0
        %v377 = vadd.f32 0.0, %v376
        %378 = vmatmul.f32.gmra.mxu0 %v315
        %v379 = vpop.f32.mrf.mxu0
        %v380 = vadd.f32 0.0, %v379
        %381 = vmatmul.f32.gmra.mxu0 %v318
        %v382 = vpop.f32.mrf.mxu0
        %v383 = vadd.f32 0.0, %v382
        %384 = vdwg.mxu0
        %v385 = vmul.f32 %v338, 0.63661975
        %v386 = vmul.f32 %v341, 0.63661975
        %v387 = vmul.f32 %v344, 0.63661975
        %v388 = vmul.f32 %v347, 0.63661975
        %v389 = vmul.f32 %v350, 0.63661975
        %v390 = vmul.f32 %v353, 0.63661975
        %v391 = vmul.f32 %v356, 0.63661975
        %v392 = vmul.f32 %v359, 0.63661975
        %v393 = vmul.f32 %v362, 0.63661975
        %v394 = vmul.f32 %v365, 0.63661975
        %v395 = vmul.f32 %v368, 0.63661975
        %v396 = vmul.f32 %v371, 0.63661975
        %v397 = vmul.f32 %v374, 0.63661975
        %v398 = vmul.f32 %v377, 0.63661975
        %v399 = vmul.f32 %v380, 0.63661975
        %v400 = vmul.f32 %v383, 0.63661975
        %v401 = vadd.f32 %v385, 0.5
        %v402 = vadd.f32 %v386, 0.5
        %v403 = vadd.f32 %v387, 0.5
        %v404 = vadd.f32 %v388, 0.5
        %v405 = vadd.f32 %v389, 0.5
        %v406 = vadd.f32 %v390, 0.5
        %v407 = vadd.f32 %v391, 0.5
        %v408 = vadd.f32 %v392, 0.5
        %v409 = vadd.f32 %v393, 0.5
        %v410 = vadd.f32 %v394, 0.5
        %v411 = vadd.f32 %v395, 0.5
        %v412 = vadd.f32 %v396, 0.5
        %v413 = vadd.f32 %v397, 0.5
        %v414 = vadd.f32 %v398, 0.5
        %v415 = vadd.f32 %v399, 0.5
        %v416 = vadd.f32 %v400, 0.5
        %v417 = vfloor.f32 %v401
        %v418 = vfloor.f32 %v402
        %v419 = vfloor.f32 %v403
        %v420 = vfloor.f32 %v404
        %v421 = vfloor.f32 %v405
        %v422 = vfloor.f32 %v406
        %v423 = vfloor.f32 %v407
        %v424 = vfloor.f32 %v408
        %v425 = vfloor.f32 %v409
        %v426 = vfloor.f32 %v410
        %v427 = vfloor.f32 %v411
        %v428 = vfloor.f32 %v412
        %v429 = vfloor.f32 %v413
        %v430 = vfloor.f32 %v414
        %v431 = vfloor.f32 %v415
        %v432 = vfloor.f32 %v416
        %v433 = vmul.f32 %v417, 1.5703125
        %v434 = vmul.f32 %v418, 1.5703125
        %v435 = vmul.f32 %v419, 1.5703125
        %v436 = vmul.f32 %v420, 1.5703125
        %v437 = vmul.f32 %v421, 1.5703125
        %v438 = vmul.f32 %v422, 1.5703125
        %v439 = vmul.f32 %v423, 1.5703125
        %v440 = vmul.f32 %v424, 1.5703125
        %v441 = vmul.f32 %v425, 1.5703125
        %v442 = vmul.f32 %v426, 1.5703125
        %v443 = vmul.f32 %v427, 1.5703125
        %v444 = vmul.f32 %v428, 1.5703125
        %v445 = vmul.f32 %v429, 1.5703125
        %v446 = vmul.f32 %v430, 1.5703125
        %v447 = vmul.f32 %v431, 1.5703125
        %v448 = vmul.f32 %v432, 1.5703125
        %v449 = vsub.f32 %v338, %v433
        %v450 = vsub.f32 %v341, %v434
        %v451 = vsub.f32 %v344, %v435
        %v452 = vsub.f32 %v347, %v436
        %v453 = vsub.f32 %v350, %v437
        %v454 = vsub.f32 %v353, %v438
        %v455 = vsub.f32 %v356, %v439
        %v456 = vsub.f32 %v359, %v440
        %v457 = vsub.f32 %v362, %v441
        %v458 = vsub.f32 %v365, %v442
        %v459 = vsub.f32 %v368, %v443
        %v460 = vsub.f32 %v371, %v444
        %v461 = vsub.f32 %v374, %v445
        %v462 = vsub.f32 %v377, %v446
        %v463 = vsub.f32 %v380, %v447
        %v464 = vsub.f32 %v383, %v448
        %v465 = vmul.f32 %v417, 0.0004837513
        %v466 = vmul.f32 %v418, 0.0004837513
        %v467 = vmul.f32 %v419, 0.0004837513
        %v468 = vmul.f32 %v420, 0.0004837513
        %v469 = vmul.f32 %v421, 0.0004837513
        %v470 = vmul.f32 %v422, 0.0004837513
        %v471 = vmul.f32 %v423, 0.0004837513
        %v472 = vmul.f32 %v424, 0.0004837513
        %v473 = vmul.f32 %v425, 0.0004837513
        %v474 = vmul.f32 %v426, 0.0004837513
        %v475 = vmul.f32 %v427, 0.0004837513
        %v476 = vmul.f32 %v428, 0.0004837513
        %v477 = vmul.f32 %v429, 0.0004837513
        %v478 = vmul.f32 %v430, 0.0004837513
        %v479 = vmul.f32 %v431, 0.0004837513
        %v480 = vmul.f32 %v432, 0.0004837513
        %v481 = vsub.f32 %v449, %v465
        %v482 = vsub.f32 %v450, %v466
        %v483 = vsub.f32 %v451, %v467
        %v484 = vsub.f32 %v452, %v468
        %v485 = vsub.f32 %v453, %v469
        %v486 = vsub.f32 %v454, %v470
        %v487 = vsub.f32 %v455, %v471
        %v488 = vsub.f32 %v456, %v472
        %v489 = vsub.f32 %v457, %v473
        %v490 = vsub.f32 %v458, %v474
        %v491 = vsub.f32 %v459, %v475
        %v492 = vsub.f32 %v460, %v476
        %v493 = vsub.f32 %v461, %v477
        %v494 = vsub.f32 %v462, %v478
        %v495 = vsub.f32 %v463, %v479
        %v496 = vsub.f32 %v464, %v480
        %v497 = vmul.f32 %v417, 7.54979e-08
        %v498 = vmul.f32 %v418, 7.54979e-08
        %v499 = vmul.f32 %v419, 7.54979e-08
        %v500 = vmul.f32 %v420, 7.54979e-08
        %v501 = vmul.f32 %v421, 7.54979e-08
        %v502 = vmul.f32 %v422, 7.54979e-08
        %v503 = vmul.f32 %v423, 7.54979e-08
        %v504 = vmul.f32 %v424, 7.54979e-08
        %v505 = vmul.f32 %v425, 7.54979e-08
        %v506 = vmul.f32 %v426, 7.54979e-08
        %v507 = vmul.f32 %v427, 7.54979e-08
        %v508 = vmul.f32 %v428, 7.54979e-08
        %v509 = vmul.f32 %v429, 7.54979e-08
        %v510 = vmul.f32 %v430, 7.54979e-08
        %v511 = vmul.f32 %v431, 7.54979e-08
        %v512 = vmul.f32 %v432, 7.54979e-08
        %v513 = vsub.f32 %v481, %v497
        %v514 = vsub.f32 %v482, %v498
        %v515 = vsub.f32 %v483, %v499
        %v516 = vsub.f32 %v484, %v500
        %v517 = vsub.f32 %v485, %v501
        %v518 = vsub.f32 %v486, %v502
        %v519 = vsub.f32 %v487, %v503
        %v520 = vsub.f32 %v488, %v504
        %v521 = vsub.f32 %v489, %v505
        %v522 = vsub.f32 %v490, %v506
        %v523 = vsub.f32 %v491, %v507
        %v524 = vsub.f32 %v492, %v508
        %v525 = vsub.f32 %v493, %v509
        %v526 = vsub.f32 %v494, %v510
        %v527 = vsub.f32 %v495, %v511
        %v528 = vsub.f32 %v496, %v512
        %v529 = vmul.f32 %v513, %v513
        %v530 = vmul.f32 %v514, %v514
        %v531 = vmul.f32 %v515, %v515
        %v532 = vmul.f32 %v516, %v516
        %v533 = vmul.f32 %v517, %v517
        %v534 = vmul.f32 %v518, %v518
        %v535 = vmul.f32 %v519, %v519
        %v536 = vmul.f32 %v520, %v520
        %v537 = vmul.f32 %v521, %v521
        %v538 = vmul.f32 %v522, %v522
        %v539 = vmul.f32 %v523, %v523
        %v540 = vmul.f32 %v524, %v524
        %v541 = vmul.f32 %v525, %v525
        %v542 = vmul.f32 %v526, %v526
        %v543 = vmul.f32 %v527, %v527
        %v544 = vmul.f32 %v528, %v528
        %v545 = vmul.f32 %v513, %v529
        %v546 = vmul.f32 %v514, %v530
        %v547 = vmul.f32 %v515, %v531
        %v548 = vmul.f32 %v516, %v532
        %v549 = vmul.f32 %v517, %v533
        %v550 = vmul.f32 %v518, %v534
        %v551 = vmul.f32 %v519, %v535
        %v552 = vmul.f32 %v520, %v536
        %v553 = vmul.f32 %v521, %v537
        %v554 = vmul.f32 %v522, %v538
        %v555 = vmul.f32 %v523, %v539
        %v556 = vmul.f32 %v524, %v540
        %v557 = vmul.f32 %v525, %v541
        %v558 = vmul.f32 %v526, %v542
        %v559 = vmul.f32 %v527, %v543
        %v560 = vmul.f32 %v528, %v544
        %v561 = vmul.f32 %v529, -0.00019515296
        %v562 = vmul.f32 %v530, -0.00019515296
        %v563 = vmul.f32 %v531, -0.00019515296
        %v564 = vmul.f32 %v532, -0.00019515296
        %v565 = vmul.f32 %v533, -0.00019515296
        %v566 = vmul.f32 %v534, -0.00019515296
        %v567 = vmul.f32 %v535, -0.00019515296
        %v568 = vmul.f32 %v536, -0.00019515296
        %v569 = vmul.f32 %v537, -0.00019515296
        %v570 = vmul.f32 %v538, -0.00019515296
        %v571 = vmul.f32 %v539, -0.00019515296
        %v572 = vmul.f32 %v540, -0.00019515296
        %v573 = vmul.f32 %v541, -0.00019515296
        %v574 = vmul.f32 %v542, -0.00019515296
        %v575 = vmul.f32 %v543, -0.00019515296
        %v576 = vmul.f32 %v544, -0.00019515296
        %v577 = vadd.f32 %v561, 0.008332161
        %v578 = vadd.f32 %v562, 0.008332161
        %v579 = vadd.f32 %v563, 0.008332161
        %v580 = vadd.f32 %v564, 0.008332161
        %v581 = vadd.f32 %v565, 0.008332161
        %v582 = vadd.f32 %v566, 0.008332161
        %v583 = vadd.f32 %v567, 0.008332161
        %v584 = vadd.f32 %v568, 0.008332161
        %v585 = vadd.f32 %v569, 0.008332161
        %v586 = vadd.f32 %v570, 0.008332161
        %v587 = vadd.f32 %v571, 0.008332161
        %v588 = vadd.f32 %v572, 0.008332161
        %v589 = vadd.f32 %v573, 0.008332161
        %v590 = vadd.f32 %v574, 0.008332161
        %v591 = vadd.f32 %v575, 0.008332161
        %v592 = vadd.f32 %v576, 0.008332161
        %v593 = vmul.f32 %v529, %v577
        %v594 = vmul.f32 %v530, %v578
        %v595 = vmul.f32 %v531, %v579
        %v596 = vmul.f32 %v532, %v580
        %v597 = vmul.f32 %v533, %v581
        %v598 = vmul.f32 %v534, %v582
        %v599 = vmul.f32 %v535, %v583
        %v600 = vmul.f32 %v536, %v584
        %v601 = vmul.f32 %v537, %v585
        %v602 = vmul.f32 %v538, %v586
        %v603 = vmul.f32 %v539, %v587
        %v604 = vmul.f32 %v540, %v588
        %v605 = vmul.f32 %v541, %v589
        %v606 = vmul.f32 %v542, %v590
        %v607 = vmul.f32 %v543, %v591
        %v608 = vmul.f32 %v544, %v592
        %v609 = vadd.f32 %v593, -0.16666655
        %v610 = vadd.f32 %v594, -0.16666655
        %v611 = vadd.f32 %v595, -0.16666655
        %v612 = vadd.f32 %v596, -0.16666655
        %v613 = vadd.f32 %v597, -0.16666655
        %v614 = vadd.f32 %v598, -0.16666655
        %v615 = vadd.f32 %v599, -0.16666655
        %v616 = vadd.f32 %v600, -0.16666655
        %v617 = vadd.f32 %v601, -0.16666655
        %v618 = vadd.f32 %v602, -0.16666655
        %v619 = vadd.f32 %v603, -0.16666655
        %v620 = vadd.f32 %v604, -0.16666655
        %v621 = vadd.f32 %v605, -0.16666655
        %v622 = vadd.f32 %v606, -0.16666655
        %v623 = vadd.f32 %v607, -0.16666655
        %v624 = vadd.f32 %v608, -0.16666655
        %v625 = vmul.f32 %v545, %v609
        %v626 = vmul.f32 %v546, %v610
        %v627 = vmul.f32 %v547, %v611
        %v628 = vmul.f32 %v548, %v612
        %v629 = vmul.f32 %v549, %v613
        %v630 = vmul.f32 %v550, %v614
        %v631 = vmul.f32 %v551, %v615
        %v632 = vmul.f32 %v552, %v616
        %v633 = vmul.f32 %v553, %v617
        %v634 = vmul.f32 %v554, %v618
        %v635 = vmul.f32 %v555, %v619
        %v636 = vmul.f32 %v556, %v620
        %v637 = vmul.f32 %v557, %v621
        %v638 = vmul.f32 %v558, %v622
        %v639 = vmul.f32 %v559, %v623
        %v640 = vmul.f32 %v560, %v624
        %v641 = vadd.f32 %v513, %v625
        %v642 = vadd.f32 %v514, %v626
        %v643 = vadd.f32 %v515, %v627
        %v644 = vadd.f32 %v516, %v628
        %v645 = vadd.f32 %v517, %v629
        %v646 = vadd.f32 %v518, %v630
        %v647 = vadd.f32 %v519, %v631
        %v648 = vadd.f32 %v520, %v632
        %v649 = vadd.f32 %v521, %v633
        %v650 = vadd.f32 %v522, %v634
        %v651 = vadd.f32 %v523, %v635
        %v652 = vadd.f32 %v524, %v636
        %v653 = vadd.f32 %v525, %v637
        %v654 = vadd.f32 %v526, %v638
        %v655 = vadd.f32 %v527, %v639
        %v656 = vadd.f32 %v528, %v640
        %v657 = vmul.f32 %v529, 0.5
        %v658 = vmul.f32 %v530, 0.5
        %v659 = vmul.f32 %v531, 0.5
        %v660 = vmul.f32 %v532, 0.5
        %v661 = vmul.f32 %v533, 0.5
        %v662 = vmul.f32 %v534, 0.5
        %v663 = vmul.f32 %v535, 0.5
        %v664 = vmul.f32 %v536, 0.5
        %v665 = vmul.f32 %v537, 0.5
        %v666 = vmul.f32 %v538, 0.5
        %v667 = vmul.f32 %v539, 0.5
        %v668 = vmul.f32 %v540, 0.5
        %v669 = vmul.f32 %v541, 0.5
        %v670 = vmul.f32 %v542, 0.5
        %v671 = vmul.f32 %v543, 0.5
        %v672 = vmul.f32 %v544, 0.5
        %v673 = vsub.f32 1.0, %v657
        %v674 = vsub.f32 1.0, %v658
        %v675 = vsub.f32 1.0, %v659
        %v676 = vsub.f32 1.0, %v660
        %v677 = vsub.f32 1.0, %v661
        %v678 = vsub.f32 1.0, %v662
        %v679 = vsub.f32 1.0, %v663
        %v680 = vsub.f32 1.0, %v664
        %v681 = vsub.f32 1.0, %v665
        %v682 = vsub.f32 1.0, %v666
        %v683 = vsub.f32 1.0, %v667
        %v684 = vsub.f32 1.0, %v668
        %v685 = vsub.f32 1.0, %v669
        %v686 = vsub.f32 1.0, %v670
        %v687 = vsub.f32 1.0, %v671
        %v688 = vsub.f32 1.0, %v672
        %v689 = vmul.f32 %v529, %v529
        %v690 = vmul.f32 %v530, %v530
        %v691 = vmul.f32 %v531, %v531
        %v692 = vmul.f32 %v532, %v532
        %v693 = vmul.f32 %v533, %v533
        %v694 = vmul.f32 %v534, %v534
        %v695 = vmul.f32 %v535, %v535
        %v696 = vmul.f32 %v536, %v536
        %v697 = vmul.f32 %v537, %v537
        %v698 = vmul.f32 %v538, %v538
        %v699 = vmul.f32 %v539, %v539
        %v700 = vmul.f32 %v540, %v540
        %v701 = vmul.f32 %v541, %v541
        %v702 = vmul.f32 %v542, %v542
        %v703 = vmul.f32 %v543, %v543
        %v704 = vmul.f32 %v544, %v544
        %v705 = vmul.f32 %v529, 2.4433157e-05
        %v706 = vmul.f32 %v530, 2.4433157e-05
        %v707 = vmul.f32 %v531, 2.4433157e-05
        %v708 = vmul.f32 %v532, 2.4433157e-05
        %v709 = vmul.f32 %v533, 2.4433157e-05
        %v710 = vmul.f32 %v534, 2.4433157e-05
        %v711 = vmul.f32 %v535, 2.4433157e-05
        %v712 = vmul.f32 %v536, 2.4433157e-05
        %v713 = vmul.f32 %v537, 2.4433157e-05
        %v714 = vmul.f32 %v538, 2.4433157e-05
        %v715 = vmul.f32 %v539, 2.4433157e-05
        %v716 = vmul.f32 %v540, 2.4433157e-05
        %v717 = vmul.f32 %v541, 2.4433157e-05
        %v718 = vmul.f32 %v542, 2.4433157e-05
        %v719 = vmul.f32 %v543, 2.4433157e-05
        %v720 = vmul.f32 %v544, 2.4433157e-05
        %v721 = vadd.f32 %v705, -0.0013887316
        %v722 = vadd.f32 %v706, -0.0013887316
        %v723 = vadd.f32 %v707, -0.0013887316
        %v724 = vadd.f32 %v708, -0.0013887316
        %v725 = vadd.f32 %v709, -0.0013887316
        %v726 = vadd.f32 %v710, -0.0013887316
        %v727 = vadd.f32 %v711, -0.0013887316
        %v728 = vadd.f32 %v712, -0.0013887316
        %v729 = vadd.f32 %v713, -0.0013887316
        %v730 = vadd.f32 %v714, -0.0013887316
        %v731 = vadd.f32 %v715, -0.0013887316
        %v732 = vadd.f32 %v716, -0.0013887316
        %v733 = vadd.f32 %v717, -0.0013887316
        %v734 = vadd.f32 %v718, -0.0013887316
        %v735 = vadd.f32 %v719, -0.0013887316
        %v736 = vadd.f32 %v720, -0.0013887316
        %v737 = vmul.f32 %v529, %v721
        %v738 = vmul.f32 %v530, %v722
        %v739 = vmul.f32 %v531, %v723
        %v740 = vmul.f32 %v532, %v724
        %v741 = vmul.f32 %v533, %v725
        %v742 = vmul.f32 %v534, %v726
        %v743 = vmul.f32 %v535, %v727
        %v744 = vmul.f32 %v536, %v728
        %v745 = vmul.f32 %v537, %v729
        %v746 = vmul.f32 %v538, %v730
        %v747 = vmul.f32 %v539, %v731
        %v748 = vmul.f32 %v540, %v732
        %v749 = vmul.f32 %v541, %v733
        %v750 = vmul.f32 %v542, %v734
        %v751 = vmul.f32 %v543, %v735
        %v752 = vmul.f32 %v544, %v736
        %v753 = vadd.f32 %v737, 0.041666646
        %v754 = vadd.f32 %v738, 0.041666646
        %v755 = vadd.f32 %v739, 0.041666646
        %v756 = vadd.f32 %v740, 0.041666646
        %v757 = vadd.f32 %v741, 0.041666646
        %v758 = vadd.f32 %v742, 0.041666646
        %v759 = vadd.f32 %v743, 0.041666646
        %v760 = vadd.f32 %v744, 0.041666646
        %v761 = vadd.f32 %v745, 0.041666646
        %v762 = vadd.f32 %v746, 0.041666646
        %v763 = vadd.f32 %v747, 0.041666646
        %v764 = vadd.f32 %v748, 0.041666646
        %v765 = vadd.f32 %v749, 0.041666646
        %v766 = vadd.f32 %v750, 0.041666646
        %v767 = vadd.f32 %v751, 0.041666646
        %v768 = vadd.f32 %v752, 0.041666646
        %v769 = vmul.f32 %v689, %v753
        %v770 = vmul.f32 %v690, %v754
        %v771 = vmul.f32 %v691, %v755
        %v772 = vmul.f32 %v692, %v756
        %v773 = vmul.f32 %v693, %v757
        %v774 = vmul.f32 %v694, %v758
        %v775 = vmul.f32 %v695, %v759
        %v776 = vmul.f32 %v696, %v760
        %v777 = vmul.f32 %v697, %v761
        %v778 = vmul.f32 %v698, %v762
        %v779 = vmul.f32 %v699, %v763
        %v780 = vmul.f32 %v700, %v764
        %v781 = vmul.f32 %v701, %v765
        %v782 = vmul.f32 %v702, %v766
        %v783 = vmul.f32 %v703, %v767
        %v784 = vmul.f32 %v704, %v768
        %v785 = vadd.f32 %v673, %v769
        %v786 = vadd.f32 %v674, %v770
        %v787 = vadd.f32 %v675, %v771
        %v788 = vadd.f32 %v676, %v772
        %v789 = vadd.f32 %v677, %v773
        %v790 = vadd.f32 %v678, %v774
        %v791 = vadd.f32 %v679, %v775
        %v792 = vadd.f32 %v680, %v776
        %v793 = vadd.f32 %v681, %v777
        %v794 = vadd.f32 %v682, %v778
        %v795 = vadd.f32 %v683, %v779
        %v796 = vadd.f32 %v684, %v780
        %v797 = vadd.f32 %v685, %v781
        %v798 = vadd.f32 %v686, %v782
        %v799 = vadd.f32 %v687, %v783
        %v800 = vadd.f32 %v688, %v784
        %v801 = vcvt.f32.s32.to.zero.pseudo %v417
        %v802 = vcvt.f32.s32.to.zero.pseudo %v418
        %v803 = vcvt.f32.s32.to.zero.pseudo %v419
        %v804 = vcvt.f32.s32.to.zero.pseudo %v420
        %v805 = vcvt.f32.s32.to.zero.pseudo %v421
        %v806 = vcvt.f32.s32.to.zero.pseudo %v422
        %v807 = vcvt.f32.s32.to.zero.pseudo %v423
        %v808 = vcvt.f32.s32.to.zero.pseudo %v424
        %v809 = vcvt.f32.s32.to.zero.pseudo %v425
        %v810 = vcvt.f32.s32.to.zero.pseudo %v426
        %v811 = vcvt.f32.s32.to.zero.pseudo %v427
        %v812 = vcvt.f32.s32.to.zero.pseudo %v428
        %v813 = vcvt.f32.s32.to.zero.pseudo %v429
        %v814 = vcvt.f32.s32.to.zero.pseudo %v430
        %v815 = vcvt.f32.s32.to.zero.pseudo %v431
        %v816 = vcvt.f32.s32.to.zero.pseudo %v432
        %v817 = vand.u32 %v801, 3
        %v818 = vand.u32 %v802, 3
        %v819 = vand.u32 %v803, 3
        %v820 = vand.u32 %v804, 3
        %v821 = vand.u32 %v805, 3
        %v822 = vand.u32 %v806, 3
        %v823 = vand.u32 %v807, 3
        %v824 = vand.u32 %v808, 3
        %v825 = vand.u32 %v809, 3
        %v826 = vand.u32 %v810, 3
        %v827 = vand.u32 %v811, 3
        %v828 = vand.u32 %v812, 3
        %v829 = vand.u32 %v813, 3
        %v830 = vand.u32 %v814, 3
        %v831 = vand.u32 %v815, 3
        %v832 = vand.u32 %v816, 3
        %v833 = vand.u32 %v817, 1
        %v834 = vand.u32 %v818, 1
        %v835 = vand.u32 %v819, 1
        %v836 = vand.u32 %v820, 1
        %v837 = vand.u32 %v821, 1
        %v838 = vand.u32 %v822, 1
        %v839 = vand.u32 %v823, 1
        %v840 = vand.u32 %v824, 1
        %v841 = vand.u32 %v825, 1
        %v842 = vand.u32 %v826, 1
        %v843 = vand.u32 %v827, 1
        %v844 = vand.u32 %v828, 1
        %v845 = vand.u32 %v829, 1
        %v846 = vand.u32 %v830, 1
        %v847 = vand.u32 %v831, 1
        %v848 = vand.u32 %v832, 1
        %vm849 = vcmp.eq.s32.totalorder %v833, 1
        %vm850 = vcmp.eq.s32.totalorder %v834, 1
        %vm851 = vcmp.eq.s32.totalorder %v835, 1
        %vm852 = vcmp.eq.s32.totalorder %v836, 1
        %vm853 = vcmp.eq.s32.totalorder %v837, 1
        %vm854 = vcmp.eq.s32.totalorder %v838, 1
        %vm855 = vcmp.eq.s32.totalorder %v839, 1
        %vm856 = vcmp.eq.s32.totalorder %v840, 1
        %vm857 = vcmp.eq.s32.totalorder %v841, 1
        %vm858 = vcmp.eq.s32.totalorder %v842, 1
        %vm859 = vcmp.eq.s32.totalorder %v843, 1
        %vm860 = vcmp.eq.s32.totalorder %v844, 1
        %vm861 = vcmp.eq.s32.totalorder %v845, 1
        %vm862 = vcmp.eq.s32.totalorder %v846, 1
        %vm863 = vcmp.eq.s32.totalorder %v847, 1
        %vm864 = vcmp.eq.s32.totalorder %v848, 1
        %v865 = vsel %vm849, %v785, %v641
        %v866 = vsel %vm850, %v786, %v642
        %v867 = vsel %vm851, %v787, %v643
        %v868 = vsel %vm852, %v788, %v644
        %v869 = vsel %vm853, %v789, %v645
        %v870 = vsel %vm854, %v790, %v646
        %v871 = vsel %vm855, %v791, %v647
        %v872 = vsel %vm856, %v792, %v648
        %v873 = vsel %vm857, %v793, %v649
        %v874 = vsel %vm858, %v794, %v650
        %v875 = vsel %vm859, %v795, %v651
        %v876 = vsel %vm860, %v796, %v652
        %v877 = vsel %vm861, %v797, %v653
        %v878 = vsel %vm862, %v798, %v654
        %v879 = vsel %vm863, %v799, %v655
        %v880 = vsel %vm864, %v800, %v656
        %v881 = vsel %vm849, %v641, %v785
        %v882 = vsel %vm850, %v642, %v786
        %v883 = vsel %vm851, %v643, %v787
        %v884 = vsel %vm852, %v644, %v788
        %v885 = vsel %vm853, %v645, %v789
        %v886 = vsel %vm854, %v646, %v790
        %v887 = vsel %vm855, %v647, %v791
        %v888 = vsel %vm856, %v648, %v792
        %v889 = vsel %vm857, %v649, %v793
        %v890 = vsel %vm858, %v650, %v794
        %v891 = vsel %vm859, %v651, %v795
        %v892 = vsel %vm860, %v652, %v796
        %v893 = vsel %vm861, %v653, %v797
        %v894 = vsel %vm862, %v654, %v798
        %v895 = vsel %vm863, %v655, %v799
        %v896 = vsel %vm864, %v656, %v800
        %vm897 = vcmp.eq.s32.totalorder %v817, 2
        %vm898 = vcmp.eq.s32.totalorder %v818, 2
        %vm899 = vcmp.eq.s32.totalorder %v819, 2
        %vm900 = vcmp.eq.s32.totalorder %v820, 2
        %vm901 = vcmp.eq.s32.totalorder %v821, 2
        %vm902 = vcmp.eq.s32.totalorder %v822, 2
        %vm903 = vcmp.eq.s32.totalorder %v823, 2
        %vm904 = vcmp.eq.s32.totalorder %v824, 2
        %vm905 = vcmp.eq.s32.totalorder %v825, 2
        %vm906 = vcmp.eq.s32.totalorder %v826, 2
        %vm907 = vcmp.eq.s32.totalorder %v827, 2
        %vm908 = vcmp.eq.s32.totalorder %v828, 2
        %vm909 = vcmp.eq.s32.totalorder %v829, 2
        %vm910 = vcmp.eq.s32.totalorder %v830, 2
        %vm911 = vcmp.eq.s32.totalorder %v831, 2
        %vm912 = vcmp.eq.s32.totalorder %v832, 2
        %vm913 = vcmp.eq.s32.totalorder %v817, 3
        %vm914 = vcmp.eq.s32.totalorder %v818, 3
        %vm915 = vcmp.eq.s32.totalorder %v819, 3
        %vm916 = vcmp.eq.s32.totalorder %v820, 3
        %vm917 = vcmp.eq.s32.totalorder %v821, 3
        %vm918 = vcmp.eq.s32.totalorder %v822, 3
        %vm919 = vcmp.eq.s32.totalorder %v823, 3
        %vm920 = vcmp.eq.s32.totalorder %v824, 3
        %vm921 = vcmp.eq.s32.totalorder %v825, 3
        %vm922 = vcmp.eq.s32.totalorder %v826, 3
        %vm923 = vcmp.eq.s32.totalorder %v827, 3
        %vm924 = vcmp.eq.s32.totalorder %v828, 3
        %vm925 = vcmp.eq.s32.totalorder %v829, 3
        %vm926 = vcmp.eq.s32.totalorder %v830, 3
        %vm927 = vcmp.eq.s32.totalorder %v831, 3
        %vm928 = vcmp.eq.s32.totalorder %v832, 3
        %vm929 = vmor %vm897, %vm913
        %vm930 = vmor %vm898, %vm914
        %vm931 = vmor %vm899, %vm915
        %vm932 = vmor %vm900, %vm916
        %vm933 = vmor %vm901, %vm917
        %vm934 = vmor %vm902, %vm918
        %vm935 = vmor %vm903, %vm919
        %vm936 = vmor %vm904, %vm920
        %vm937 = vmor %vm905, %vm921
        %vm938 = vmor %vm906, %vm922
        %vm939 = vmor %vm907, %vm923
        %vm940 = vmor %vm908, %vm924
        %vm941 = vmor %vm909, %vm925
        %vm942 = vmor %vm910, %vm926
        %vm943 = vmor %vm911, %vm927
        %vm944 = vmor %vm912, %vm928
        %vm945 = vcmp.eq.s32.totalorder %v817, 1
        %vm946 = vcmp.eq.s32.totalorder %v818, 1
        %vm947 = vcmp.eq.s32.totalorder %v819, 1
        %vm948 = vcmp.eq.s32.totalorder %v820, 1
        %vm949 = vcmp.eq.s32.totalorder %v821, 1
        %vm950 = vcmp.eq.s32.totalorder %v822, 1
        %vm951 = vcmp.eq.s32.totalorder %v823, 1
        %vm952 = vcmp.eq.s32.totalorder %v824, 1
        %vm953 = vcmp.eq.s32.totalorder %v825, 1
        %vm954 = vcmp.eq.s32.totalorder %v826, 1
        %vm955 = vcmp.eq.s32.totalorder %v827, 1
        %vm956 = vcmp.eq.s32.totalorder %v828, 1
        %vm957 = vcmp.eq.s32.totalorder %v829, 1
        %vm958 = vcmp.eq.s32.totalorder %v830, 1
        %vm959 = vcmp.eq.s32.totalorder %v831, 1
        %vm960 = vcmp.eq.s32.totalorder %v832, 1
        %vm961 = vmor %vm945, %vm897
        %vm962 = vmor %vm946, %vm898
        %vm963 = vmor %vm947, %vm899
        %vm964 = vmor %vm948, %vm900
        %vm965 = vmor %vm949, %vm901
        %vm966 = vmor %vm950, %vm902
        %vm967 = vmor %vm951, %vm903
        %vm968 = vmor %vm952, %vm904
        %vm969 = vmor %vm953, %vm905
        %vm970 = vmor %vm954, %vm906
        %vm971 = vmor %vm955, %vm907
        %vm972 = vmor %vm956, %vm908
        %vm973 = vmor %vm957, %vm909
        %vm974 = vmor %vm958, %vm910
        %vm975 = vmor %vm959, %vm911
        %vm976 = vmor %vm960, %vm912
        %v977 = vsub.f32 0.0, %v865
        %v978 = vsub.f32 0.0, %v866
        %v979 = vsub.f32 0.0, %v867
        %v980 = vsub.f32 0.0, %v868
        %v981 = vsub.f32 0.0, %v869
        %v982 = vsub.f32 0.0, %v870
        %v983 = vsub.f32 0.0, %v871
        %v984 = vsub.f32 0.0, %v872
        %v985 = vsub.f32 0.0, %v873
        %v986 = vsub.f32 0.0, %v874
        %v987 = vsub.f32 0.0, %v875
        %v988 = vsub.f32 0.0, %v876
        %v989 = vsub.f32 0.0, %v877
        %v990 = vsub.f32 0.0, %v878
        %v991 = vsub.f32 0.0, %v879
        %v992 = vsub.f32 0.0, %v880
        %v993 = vsel %vm929, %v977, %v865
        %v994 = vsel %vm930, %v978, %v866
        %v995 = vsel %vm931, %v979, %v867
        %v996 = vsel %vm932, %v980, %v868
        %v997 = vsel %vm933, %v981, %v869
        %v998 = vsel %vm934, %v982, %v870
        %v999 = vsel %vm935, %v983, %v871
        %v1000 = vsel %vm936, %v984, %v872
        %v1001 = vsel %vm937, %v985, %v873
        %v1002 = vsel %vm938, %v986, %v874
        %v1003 = vsel %vm939, %v987, %v875
        %v1004 = vsel %vm940, %v988, %v876
        %v1005 = vsel %vm941, %v989, %v877
        %v1006 = vsel %vm942, %v990, %v878
        %v1007 = vsel %vm943, %v991, %v879
        %v1008 = vsel %vm944, %v992, %v880
        %v1009 = vsub.f32 0.0, %v881
        %v1010 = vsub.f32 0.0, %v882
        %v1011 = vsub.f32 0.0, %v883
        %v1012 = vsub.f32 0.0, %v884
        %v1013 = vsub.f32 0.0, %v885
        %v1014 = vsub.f32 0.0, %v886
        %v1015 = vsub.f32 0.0, %v887
        %v1016 = vsub.f32 0.0, %v888
        %v1017 = vsub.f32 0.0, %v889
        %v1018 = vsub.f32 0.0, %v890
        %v1019 = vsub.f32 0.0, %v891
        %v1020 = vsub.f32 0.0, %v892
        %v1021 = vsub.f32 0.0, %v893
        %v1022 = vsub.f32 0.0, %v894
        %v1023 = vsub.f32 0.0, %v895
        %v1024 = vsub.f32 0.0, %v896
        %v1025 = vsel %vm961, %v1009, %v881
        %v1026 = vsel %vm962, %v1010, %v882
        %v1027 = vsel %vm963, %v1011, %v883
        %v1028 = vsel %vm964, %v1012, %v884
        %v1029 = vsel %vm965, %v1013, %v885
        %v1030 = vsel %vm966, %v1014, %v886
        %v1031 = vsel %vm967, %v1015, %v887
        %v1032 = vsel %vm968, %v1016, %v888
        %v1033 = vsel %vm969, %v1017, %v889
        %v1034 = vsel %vm970, %v1018, %v890
        %v1035 = vsel %vm971, %v1019, %v891
        %v1036 = vsel %vm972, %v1020, %v892
        %v1037 = vsel %vm973, %v1021, %v893
        %v1038 = vsel %vm974, %v1022, %v894
        %v1039 = vsel %vm975, %v1023, %v895
        %v1040 = vsel %vm976, %v1024, %v896
        %v1041 = vpack.c.bf16 %v994, %v993
        %v1042 = vpack.c.bf16 %v1026, %v1025
        %v1043 = vpack.c.bf16 %v996, %v995
        %v1044 = vpack.c.bf16 %v1028, %v1027
        %v1045 = vpack.c.bf16 %v998, %v997
        %v1046 = vpack.c.bf16 %v1030, %v1029
        %v1047 = vpack.c.bf16 %v1000, %v999
        %v1048 = vpack.c.bf16 %v1032, %v1031
        %v1049 = vpack.c.bf16 %v1002, %v1001
        %v1050 = vpack.c.bf16 %v1034, %v1033
        %v1051 = vpack.c.bf16 %v1004, %v1003
        %v1052 = vpack.c.bf16 %v1036, %v1035
        %v1053 = vpack.c.bf16 %v1006, %v1005
        %v1054 = vpack.c.bf16 %v1038, %v1037
        %v1055 = vpack.c.bf16 %v1008, %v1007
        %v1056 = vpack.c.bf16 %v1040, %v1039
        %v1057 = vld [vmem:[%s2] sm:$0xf]
        %v1058 = vld [vmem:[%s2 + $0x4] sm:$0xf]
        %v1059 = vld [vmem:[%s2 + $0x8] sm:$0xf]
        %v1060 = vld [vmem:[%s2 + $0xc] sm:$0xf]
        %v1061 = vld [vmem:[%s2 + $0x10] sm:$0xf]
        %v1062 = vld [vmem:[%s2 + $0x14] sm:$0xf]
        %v1063 = vld [vmem:[%s2 + $0x18] sm:$0xf]
        %v1064 = vld [vmem:[%s2 + $0x1c] sm:$0xf]
        %v1065 = vld [vmem:[%s2 + $0x20] sm:$0xf]
        %v1066 = vld [vmem:[%s2 + $0x24] sm:$0xf]
        %v1067 = vld [vmem:[%s2 + $0x28] sm:$0xf]
        %v1068 = vld [vmem:[%s2 + $0x2c] sm:$0xf]
        %v1069 = vld [vmem:[%s2 + $0x30] sm:$0xf]
        %v1070 = vld [vmem:[%s2 + $0x34] sm:$0xf]
        %v1071 = vld [vmem:[%s2 + $0x38] sm:$0xf]
        %v1072 = vld [vmem:[%s2 + $0x3c] sm:$0xf]
        %v1073 = vld [vmem:[%s2 + $0x40] sm:$0xf]
        %v1074 = vld [vmem:[%s2 + $0x44] sm:$0xf]
        %v1075 = vld [vmem:[%s2 + $0x48] sm:$0xf]
        %v1076 = vld [vmem:[%s2 + $0x4c] sm:$0xf]
        %v1077 = vld [vmem:[%s2 + $0x50] sm:$0xf]
        %v1078 = vld [vmem:[%s2 + $0x54] sm:$0xf]
        %v1079 = vld [vmem:[%s2 + $0x58] sm:$0xf]
        %v1080 = vld [vmem:[%s2 + $0x5c] sm:$0xf]
        %v1081 = vld [vmem:[%s2 + $0x60] sm:$0xf]
        %v1082 = vld [vmem:[%s2 + $0x64] sm:$0xf]
        %v1083 = vld [vmem:[%s2 + $0x68] sm:$0xf]
        %v1084 = vld [vmem:[%s2 + $0x6c] sm:$0xf]
        %v1085 = vld [vmem:[%s2 + $0x70] sm:$0xf]
        %v1086 = vld [vmem:[%s2 + $0x74] sm:$0xf]
        %v1087 = vld [vmem:[%s2 + $0x78] sm:$0xf]
        %v1088 = vld [vmem:[%s2 + $0x7c] sm:$0xf]
        %v1089 = vld [vmem:[%s3] sm:$0x1]
        %v1091 = vperm.slane %v1089, 0
        %v1125 = vunpack.c.l.b16 %v1057
        %v1126 = vunpack.c.l.b16 %v1058
        %v1127 = vunpack.c.l.b16 %v1059
        %v1128 = vunpack.c.l.b16 %v1060
        %v1129 = vunpack.c.l.b16 %v1061
        %v1130 = vunpack.c.l.b16 %v1062
        %v1131 = vunpack.c.l.b16 %v1063
        %v1132 = vunpack.c.l.b16 %v1064
        %v1133 = vunpack.c.l.b16 %v1065
        %v1134 = vunpack.c.l.b16 %v1066
        %v1135 = vunpack.c.l.b16 %v1067
        %v1136 = vunpack.c.l.b16 %v1068
        %v1137 = vunpack.c.l.b16 %v1069
        %v1138 = vunpack.c.l.b16 %v1070
        %v1139 = vunpack.c.l.b16 %v1071
        %v1140 = vunpack.c.l.b16 %v1072
        %v1141 = vunpack.c.l.b16 %v1073
        %v1142 = vunpack.c.l.b16 %v1074
        %v1143 = vunpack.c.l.b16 %v1075
        %v1144 = vunpack.c.l.b16 %v1076
        %v1145 = vunpack.c.l.b16 %v1077
        %v1146 = vunpack.c.l.b16 %v1078
        %v1147 = vunpack.c.l.b16 %v1079
        %v1148 = vunpack.c.l.b16 %v1080
        %v1149 = vunpack.c.l.b16 %v1081
        %v1150 = vunpack.c.l.b16 %v1082
        %v1151 = vunpack.c.l.b16 %v1083
        %v1152 = vunpack.c.l.b16 %v1084
        %v1153 = vunpack.c.l.b16 %v1085
        %v1154 = vunpack.c.l.b16 %v1086
        %v1155 = vunpack.c.l.b16 %v1087
        %v1156 = vunpack.c.l.b16 %v1088
        %v1157 = vpack.c.b16 %v1126, %v1125
        %v1158 = vpack.c.b16 %v1128, %v1127
        %v1159 = vpack.c.b16 %v1130, %v1129
        %v1160 = vpack.c.b16 %v1132, %v1131
        %v1161 = vpack.c.b16 %v1134, %v1133
        %v1162 = vpack.c.b16 %v1136, %v1135
        %v1163 = vpack.c.b16 %v1138, %v1137
        %v1164 = vpack.c.b16 %v1140, %v1139
        %v1165 = vpack.c.b16 %v1142, %v1141
        %v1166 = vpack.c.b16 %v1144, %v1143
        %v1167 = vpack.c.b16 %v1146, %v1145
        %v1168 = vpack.c.b16 %v1148, %v1147
        %v1169 = vpack.c.b16 %v1150, %v1149
        %v1170 = vpack.c.b16 %v1152, %v1151
        %v1171 = vpack.c.b16 %v1154, %v1153
        %v1172 = vpack.c.b16 %v1156, %v1155
        %1189 = vmatpush.bf16.msra.mxu0 %v1164
        %1190 = vmatpush.bf16.msra.mxu0 %v1163
        %1191 = vmatpush.bf16.msra.mxu0 %v1162
        %1192 = vmatpush.bf16.msra.mxu0 %v1161
        %1193 = vmatpush.bf16.msra.mxu0 %v1160
        %1194 = vmatpush.bf16.msra.mxu0 %v1159
        %1195 = vmatpush.bf16.msra.mxu0 %v1158
        %1196 = vmatpush.bf16.msra.mxu0 %v1157
        %1197 = vmatmul.bf16.gmra.mxu0 %v1041
        %v1198 = vpop.f32.mrf.mxu0
        %v1199 = vadd.f32 %v1091, %v1198
        %v1200 = vpop.f32.mrf.mxu0
        %v1201 = vadd.f32 %v1091, %v1200
        %1202 = vmatmul.bf16.gmra.mxu0 %v1043
        %v1203 = vpop.f32.mrf.mxu0
        %v1204 = vadd.f32 %v1091, %v1203
        %v1205 = vpop.f32.mrf.mxu0
        %v1206 = vadd.f32 %v1091, %v1205
        %1207 = vmatmul.bf16.gmra.mxu0 %v1045
        %v1208 = vpop.f32.mrf.mxu0
        %v1209 = vadd.f32 %v1091, %v1208
        %v1210 = vpop.f32.mrf.mxu0
        %v1211 = vadd.f32 %v1091, %v1210
        %1212 = vmatmul.bf16.gmra.mxu0 %v1047
        %v1213 = vpop.f32.mrf.mxu0
        %v1214 = vadd.f32 %v1091, %v1213
        %v1215 = vpop.f32.mrf.mxu0
        %v1216 = vadd.f32 %v1091, %v1215
        %1217 = vmatmul.bf16.gmra.mxu0 %v1049
        %v1218 = vpop.f32.mrf.mxu0
        %v1219 = vadd.f32 %v1091, %v1218
        %v1220 = vpop.f32.mrf.mxu0
        %v1221 = vadd.f32 %v1091, %v1220
        %1222 = vmatmul.bf16.gmra.mxu0 %v1051
        %v1223 = vpop.f32.mrf.mxu0
        %v1224 = vadd.f32 %v1091, %v1223
        %v1225 = vpop.f32.mrf.mxu0
        %v1226 = vadd.f32 %v1091, %v1225
        %1227 = vmatmul.bf16.gmra.mxu0 %v1053
        %v1228 = vpop.f32.mrf.mxu0
        %v1229 = vadd.f32 %v1091, %v1228
        %v1230 = vpop.f32.mrf.mxu0
        %v1231 = vadd.f32 %v1091, %v1230
        %1232 = vmatmul.bf16.gmra.mxu0 %v1055
        %v1233 = vpop.f32.mrf.mxu0
        %v1234 = vadd.f32 %v1091, %v1233
        %v1235 = vpop.f32.mrf.mxu0
        %v1236 = vadd.f32 %v1091, %v1235
        %1237 = vdwg.mxu0
        %1238 = vmatpush.bf16.msra.mxu0 %v1172
        %1239 = vmatpush.bf16.msra.mxu0 %v1171
        %1240 = vmatpush.bf16.msra.mxu0 %v1170
        %1241 = vmatpush.bf16.msra.mxu0 %v1169
        %1242 = vmatpush.bf16.msra.mxu0 %v1168
        %1243 = vmatpush.bf16.msra.mxu0 %v1167
        %1244 = vmatpush.bf16.msra.mxu0 %v1166
        %1245 = vmatpush.bf16.msra.mxu0 %v1165
        %1246 = vmatmul.bf16.gmra.mxu0 %v1042
        %v1247 = vpop.f32.mrf.mxu0
        %v1248 = vadd.f32 %v1199, %v1247
        %v1249 = vpop.f32.mrf.mxu0
        %v1250 = vadd.f32 %v1201, %v1249
        %1251 = vmatmul.bf16.gmra.mxu0 %v1044
        %v1252 = vpop.f32.mrf.mxu0
        %v1253 = vadd.f32 %v1204, %v1252
        %v1254 = vpop.f32.mrf.mxu0
        %v1255 = vadd.f32 %v1206, %v1254
        %1256 = vmatmul.bf16.gmra.mxu0 %v1046
        %v1257 = vpop.f32.mrf.mxu0
        %v1258 = vadd.f32 %v1209, %v1257
        %v1259 = vpop.f32.mrf.mxu0
        %v1260 = vadd.f32 %v1211, %v1259
        %1261 = vmatmul.bf16.gmra.mxu0 %v1048
        %v1262 = vpop.f32.mrf.mxu0
        %v1263 = vadd.f32 %v1214, %v1262
        %v1264 = vpop.f32.mrf.mxu0
        %v1265 = vadd.f32 %v1216, %v1264
        %1266 = vmatmul.bf16.gmra.mxu0 %v1050
        %v1267 = vpop.f32.mrf.mxu0
        %v1268 = vadd.f32 %v1219, %v1267
        %v1269 = vpop.f32.mrf.mxu0
        %v1270 = vadd.f32 %v1221, %v1269
        %1271 = vmatmul.bf16.gmra.mxu0 %v1052
        %v1272 = vpop.f32.mrf.mxu0
        %v1273 = vadd.f32 %v1224, %v1272
        %v1274 = vpop.f32.mrf.mxu0
        %v1275 = vadd.f32 %v1226, %v1274
        %1276 = vmatmul.bf16.gmra.mxu0 %v1054
        %v1277 = vpop.f32.mrf.mxu0
        %v1278 = vadd.f32 %v1229, %v1277
        %v1279 = vpop.f32.mrf.mxu0
        %v1280 = vadd.f32 %v1231, %v1279
        %1281 = vmatmul.bf16.gmra.mxu0 %v1056
        %v1282 = vpop.f32.mrf.mxu0
        %v1283 = vadd.f32 %v1234, %v1282
        %v1284 = vpop.f32.mrf.mxu0
        %v1285 = vadd.f32 %v1236, %v1284
        %1286 = vdwg.mxu0
        %v1287 = vmax.f32 %v1248, 0.0
        %v1288 = vmax.f32 %v1250, 0.0
        %v1289 = vmax.f32 %v1253, 0.0
        %v1290 = vmax.f32 %v1255, 0.0
        %v1291 = vmax.f32 %v1258, 0.0
        %v1292 = vmax.f32 %v1260, 0.0
        %v1293 = vmax.f32 %v1263, 0.0
        %v1294 = vmax.f32 %v1265, 0.0
        %v1295 = vmax.f32 %v1268, 0.0
        %v1296 = vmax.f32 %v1270, 0.0
        %v1297 = vmax.f32 %v1273, 0.0
        %v1298 = vmax.f32 %v1275, 0.0
        %v1299 = vmax.f32 %v1278, 0.0
        %v1300 = vmax.f32 %v1280, 0.0
        %v1301 = vmax.f32 %v1283, 0.0
        %v1302 = vmax.f32 %v1285, 0.0
        %v1303 = vpack.c.bf16 %v1288, %v1287
        %v1304 = vpack.c.bf16 %v1290, %v1289
        %v1305 = vpack.c.bf16 %v1292, %v1291
        %v1306 = vpack.c.bf16 %v1294, %v1293
        %v1307 = vpack.c.bf16 %v1296, %v1295
        %v1308 = vpack.c.bf16 %v1298, %v1297
        %v1309 = vpack.c.bf16 %v1300, %v1299
        %v1310 = vpack.c.bf16 %v1302, %v1301
        %v1311 = vld [vmem:[%s4] sm:$0xf]
        %v1312 = vld [vmem:[%s4 + $0x4] sm:$0xf]
        %v1313 = vld [vmem:[%s4 + $0x8] sm:$0xf]
        %v1314 = vld [vmem:[%s4 + $0xc] sm:$0xf]
        %v1315 = vld [vmem:[%s4 + $0x10] sm:$0xf]
        %v1316 = vld [vmem:[%s4 + $0x14] sm:$0xf]
        %v1317 = vld [vmem:[%s4 + $0x18] sm:$0xf]
        %v1318 = vld [vmem:[%s4 + $0x1c] sm:$0xf]
        %v1319 = vld [vmem:[%s4 + $0x20] sm:$0xf]
        %v1320 = vld [vmem:[%s4 + $0x24] sm:$0xf]
        %v1321 = vld [vmem:[%s4 + $0x28] sm:$0xf]
        %v1322 = vld [vmem:[%s4 + $0x2c] sm:$0xf]
        %v1323 = vld [vmem:[%s4 + $0x30] sm:$0xf]
        %v1324 = vld [vmem:[%s4 + $0x34] sm:$0xf]
        %v1325 = vld [vmem:[%s4 + $0x38] sm:$0xf]
        %v1326 = vld [vmem:[%s4 + $0x3c] sm:$0xf]
        %v1327 = vld [vmem:[%s5] sm:$0x1]
        %v1329 = vperm.slane %v1327, 0
        %v1347 = vunpack.c.l.b16 %v1311
        %v1348 = vunpack.c.l.b16 %v1312
        %v1349 = vunpack.c.l.b16 %v1313
        %v1350 = vunpack.c.l.b16 %v1314
        %v1351 = vunpack.c.l.b16 %v1315
        %v1352 = vunpack.c.l.b16 %v1316
        %v1353 = vunpack.c.l.b16 %v1317
        %v1354 = vunpack.c.l.b16 %v1318
        %v1355 = vunpack.c.l.b16 %v1319
        %v1356 = vunpack.c.l.b16 %v1320
        %v1357 = vunpack.c.l.b16 %v1321
        %v1358 = vunpack.c.l.b16 %v1322
        %v1359 = vunpack.c.l.b16 %v1323
        %v1360 = vunpack.c.l.b16 %v1324
        %v1361 = vunpack.c.l.b16 %v1325
        %v1362 = vunpack.c.l.b16 %v1326
        %v1363 = vpack.c.b16 %v1348, %v1347
        %v1364 = vpack.c.b16 %v1350, %v1349
        %v1365 = vpack.c.b16 %v1352, %v1351
        %v1366 = vpack.c.b16 %v1354, %v1353
        %v1367 = vpack.c.b16 %v1356, %v1355
        %v1368 = vpack.c.b16 %v1358, %v1357
        %v1369 = vpack.c.b16 %v1360, %v1359
        %v1370 = vpack.c.b16 %v1362, %v1361
        %1379 = vmatpush.bf16.msra.mxu0 %v1370
        %1380 = vmatpush.bf16.msra.mxu0 %v1369
        %1381 = vmatpush.bf16.msra.mxu0 %v1368
        %1382 = vmatpush.bf16.msra.mxu0 %v1367
        %1383 = vmatpush.bf16.msra.mxu0 %v1366
        %1384 = vmatpush.bf16.msra.mxu0 %v1365
        %1385 = vmatpush.bf16.msra.mxu0 %v1364
        %1386 = vmatpush.bf16.msra.mxu0 %v1363
        %1387 = vmatmul.bf16.gmra.mxu0 %v1303
        %v1388 = vpop.f32.mrf.mxu0
        %v1389 = vadd.f32 %v1329, %v1388
        %v1390 = vpop.f32.mrf.mxu0
        %v1391 = vadd.f32 %v1329, %v1390
        %1392 = vmatmul.bf16.gmra.mxu0 %v1304
        %v1393 = vpop.f32.mrf.mxu0
        %v1394 = vadd.f32 %v1329, %v1393
        %v1395 = vpop.f32.mrf.mxu0
        %v1396 = vadd.f32 %v1329, %v1395
        %1397 = vmatmul.bf16.gmra.mxu0 %v1305
        %v1398 = vpop.f32.mrf.mxu0
        %v1399 = vadd.f32 %v1329, %v1398
        %v1400 = vpop.f32.mrf.mxu0
        %v1401 = vadd.f32 %v1329, %v1400
        %1402 = vmatmul.bf16.gmra.mxu0 %v1306
        %v1403 = vpop.f32.mrf.mxu0
        %v1404 = vadd.f32 %v1329, %v1403
        %v1405 = vpop.f32.mrf.mxu0
        %v1406 = vadd.f32 %v1329, %v1405
        %1407 = vmatmul.bf16.gmra.mxu0 %v1307
        %v1408 = vpop.f32.mrf.mxu0
        %v1409 = vadd.f32 %v1329, %v1408
        %v1410 = vpop.f32.mrf.mxu0
        %v1411 = vadd.f32 %v1329, %v1410
        %1412 = vmatmul.bf16.gmra.mxu0 %v1308
        %v1413 = vpop.f32.mrf.mxu0
        %v1414 = vadd.f32 %v1329, %v1413
        %v1415 = vpop.f32.mrf.mxu0
        %v1416 = vadd.f32 %v1329, %v1415
        %1417 = vmatmul.bf16.gmra.mxu0 %v1309
        %v1418 = vpop.f32.mrf.mxu0
        %v1419 = vadd.f32 %v1329, %v1418
        %v1420 = vpop.f32.mrf.mxu0
        %v1421 = vadd.f32 %v1329, %v1420
        %1422 = vmatmul.bf16.gmra.mxu0 %v1310
        %v1423 = vpop.f32.mrf.mxu0
        %v1424 = vadd.f32 %v1329, %v1423
        %v1425 = vpop.f32.mrf.mxu0
        %v1426 = vadd.f32 %v1329, %v1425
        %1427 = vdwg.mxu0
        %v1428 = vpack.c.bf16 %v1389, %v1389
        %v1429 = vpack.c.bf16 %v1391, %v1391
        %v1430 = vpack.c.bf16 %v1394, %v1394
        %v1431 = vpack.c.bf16 %v1396, %v1396
        %v1432 = vpack.c.bf16 %v1399, %v1399
        %v1433 = vpack.c.bf16 %v1401, %v1401
        %v1434 = vpack.c.bf16 %v1404, %v1404
        %v1435 = vpack.c.bf16 %v1406, %v1406
        %v1436 = vpack.c.bf16 %v1409, %v1409
        %v1437 = vpack.c.bf16 %v1411, %v1411
        %v1438 = vpack.c.bf16 %v1414, %v1414
        %v1439 = vpack.c.bf16 %v1416, %v1416
        %v1440 = vpack.c.bf16 %v1419, %v1419
        %v1441 = vpack.c.bf16 %v1421, %v1421
        %v1442 = vpack.c.bf16 %v1424, %v1424
        %v1443 = vpack.c.bf16 %v1426, %v1426
        %1444 = vst [vmem:[%s245] sm:$0xf] %v1428
        %1445 = vst [vmem:[%s245 + $0x4] sm:$0xf] %v1429
        %1446 = vst [vmem:[%s245 + $0x8] sm:$0xf] %v1430
        %1447 = vst [vmem:[%s245 + $0xc] sm:$0xf] %v1431
        %1448 = vst [vmem:[%s245 + $0x10] sm:$0xf] %v1432
        %1449 = vst [vmem:[%s245 + $0x14] sm:$0xf] %v1433
        %1450 = vst [vmem:[%s245 + $0x18] sm:$0xf] %v1434
        %1451 = vst [vmem:[%s245 + $0x1c] sm:$0xf] %v1435
        %1452 = vst [vmem:[%s245 + $0x20] sm:$0xf] %v1436
        %1453 = vst [vmem:[%s245 + $0x24] sm:$0xf] %v1437
        %1454 = vst [vmem:[%s245 + $0x28] sm:$0xf] %v1438
        %1455 = vst [vmem:[%s245 + $0x2c] sm:$0xf] %v1439
        %1456 = vst [vmem:[%s245 + $0x30] sm:$0xf] %v1440
        %1457 = vst [vmem:[%s245 + $0x34] sm:$0xf] %v1441
        %1458 = vst [vmem:[%s245 + $0x38] sm:$0xf] %v1442
        %1459 = vst [vmem:[%s245 + $0x3c] sm:$0xf] %v1443
        %s1460 = sand.u32 %s159, 1
        %s1461 = scalar_lea.sflag [#allocation3], %s1460
        %s1462 = sand.u32 %s159, 1
        %s1463 = smul.addr %s1462, 64
        %s1464 = scalar_lea.vmem [#allocation2], %s1463
        // Predicated region
        $region45: #{tpu_custom_call.1} parent=43 // pred_check
          %p1465 = pneg %p169
        $region46: #{tpu_custom_call.1} parent=43 // pred_check_branch
          %1467 = sbr.rel (%p1465) target = $region48
        $region47: #{tpu_custom_call.1} parent=43 // pred_region
          %s1468 = smul.u32 16, %s20
          %1470 = vsyncadd %s1461, 0
          %s1471 = smul.addr %s1468, 4
          %s1472 = scalar_lea.hbm %s6, %s1471
          %s1473 = sshll.u32 %s1464, 4
          %s1474 = int_to_ptr.vmem [resolvable:$true] %s1473
          %s1475 = sshll.u32 %s1472, 4
          %s1476 = int_to_ptr.hbm [resolvable:$true] %s1475
          %1481 = dma.vmem_to_hbm [thread:$0]  %s1474, 1024, %s1476, %s1461, 64, 64, 4
        $region48: #{tpu_custom_call.1} parent=43 // pred_fallthru
          _
      $region44: #{tpu_custom_call.1} parent=5 // pred_fallthru
        _
      %p1482 = scmp.le.s32.totalorder 2, %s15
      // Predicated region
      $region49: #{tpu_custom_call.1} parent=5 // pred_check
        %p1483 = pneg %p1482
      $region50: #{tpu_custom_call.1} parent=5 // pred_check_branch
        %1485 = sbr.rel (%p1483) target = $region52
      $region51: #{tpu_custom_call.1} parent=5 // pred_region
        %s1486 = ssub.s32 %s15, 2
        // Predicated region
        $region53: #{tpu_custom_call.1} parent=51 // pred_check
          %p1487 = pneg %p175
        $region54: #{tpu_custom_call.1} parent=51 // pred_check_branch
          %1489 = sbr.rel (%p1487) target = $region56
        $region55: #{tpu_custom_call.1} parent=51 // pred_region
          %s1490 = sand.u32 %s160, 1
          %s1491 = scalar_lea.sflag [#allocation3], %s1490
          %s1492 = sand.u32 %s160, 1
          %s1493 = smul.addr %s1492, 64
          %s1494 = scalar_lea.vmem [#allocation2], %s1493
          %1496 = dma.done %s1491, 1024
        $region56: #{tpu_custom_call.1} parent=51 // pred_fallthru
          _
      $region52: #{tpu_custom_call.1} parent=5 // pred_fallthru
        _
    $region6: #{tpu_custom_call.1} parent=1 // loop_footer
      %s19 = sadd.s32 1, %s15
    $region7: #{tpu_custom_call.1} parent=1 // loop_footer_branch
      %14 = sbr.rel target = $region3
    $region8: #{tpu_custom_call.1} parent=1 // loop_exit
      _
    %1497 = vsyncpa [#allocation3], 1
    %s1498 = scalar_lea.sflag [#allocation3], 1
    %1499 = vsyncpa %s1498, 1

</llo_original>
